<compile_context>
chip_gen: v7x
topology: tpu7x:2x2x1
jax: 0.10.0
libtpu: 0.0.40
codegen_flags: <defaults>
</compile_context>

<pallas_src>
import jax
import jax.numpy as jnp
from jax import lax
from jax.experimental import pallas as pl
from jax.experimental.pallas import tpu as pltpu


def netvlad_forward(img_nhwc, w_conv, b_conv, w_sa, centroids):
    """Fused encoder (3x3 'same' conv + ReLU) + NetVLAD pooling.

    img_nhwc:  (N, H, W, Cin) f32
    w_conv:    (3, 3, Cin, Cout), b_conv: (Cout,)
    w_sa:      (Cout, K) soft-assignment 1x1 conv (no bias)
    centroids: (K, Cout)
    returns:   (N, K*Cout) f32 L2-normalized VLAD descriptors.
    """
    N, H, W, Cin = img_nhwc.shape
    Cout = w_conv.shape[-1]
    K = w_sa.shape[1]
    P = H * W
    Kp = 128 * ((K + 127) // 128)      # lane-pad clusters so softmax is lane-dense

    # 1-pixel halo only (no HBM im2col blow-up); im2col is built in VMEM.
    xp = jnp.pad(img_nhwc, ((0, 0), (1, 1), (1, 1), (0, 0)))
    # (kh, kw, cin) contraction order matches the in-kernel tap concat order.
    w_col = w_conv.reshape(9 * Cin, Cout).astype(jnp.bfloat16)
    bias = b_conv.reshape(1, Cout).astype(jnp.float32)
    w_pad = (jnp.zeros((Cout, Kp), jnp.float32).at[:, :K].set(w_sa)
             .astype(jnp.bfloat16))
    c_pad = jnp.zeros((Kp, Cout), jnp.float32).at[:K, :].set(centroids)

    inv_sqrt_k = float(K) ** -0.5      # global L2 norm == sqrt(K) after intra-norm

    def kernel(xp_ref, w_ref, b_ref, wsa_ref, c_ref, o_ref):
        # -------- encoder: 3x3 "same" conv + ReLU --------------------------
        # TODO(synk): the real VGG16 encoder (13 convs + maxpools, truncated
        # at conv5_3) is represented by this single conv block; for deep
        # layers (Cin=512) use the 9-tap f32-accumulated loop, row-tile the
        # grid (row block + 1-row halo) and budget vmem_limit_bytes for
        # v7x's 64 MiB VMEM.
        xp_img = xp_ref[0].astype(jnp.bfloat16)              # single bf16 cast
        taps = [xp_img[dh:dh + H, dw:dw + W, :].reshape(P, Cin)
                for dh in range(3) for dw in range(3)]
        x_col = jnp.concatenate(taps, axis=-1)               # (P, 9*Cin) bf16
        conv = jnp.dot(x_col, w_ref[...], preferred_element_type=jnp.float32)
        feat = jnp.maximum(conv + b_ref[...], 0.0)           # (P, Cout) f32

        # -------- NetVLAD pooling -------------------------------------------
        # Descriptor L2-normalize (f32, eps = 1e-12 on the norm).
        ssq = jnp.sum(feat * feat, axis=-1, keepdims=True)
        xn = feat * lax.rsqrt(jnp.maximum(ssq, 1e-24))
        xn_bf = xn.astype(jnp.bfloat16)

        # Soft-assignment logits -> masked softmax over lane-padded clusters.
        logits = jnp.dot(xn_bf, wsa_ref[...], preferred_element_type=jnp.float32)
        logits = logits - jnp.max(logits, axis=-1, keepdims=True)
        lane = lax.broadcasted_iota(jnp.int32, logits.shape, 1)
        e = jnp.where(lane < K, jnp.exp(logits), 0.0)        # mask padded clusters
        a = e * pl.reciprocal(jnp.sum(e, axis=-1, keepdims=True), approx=True)
        a_bf = a.astype(jnp.bfloat16)                        # (P, Kp)

        # vlad[k,c] = sum_p a[p,k]*xn[p,c] - (sum_p a[p,k]) * centroid[k,c]
        vlad = lax.dot_general(a_bf, xn_bf, (((0,), (0,)), ((), ())),
                               preferred_element_type=jnp.float32)      # (Kp, C)
        # a_sum via a narrow lane-dense (P, 128) ones matmul (MXU has slack);
        # every column equals sum_p a[p,k] -> broadcast column 0.
        ones_blk = jnp.ones((P, 128), jnp.bfloat16)
        asum = lax.dot_general(a_bf, ones_blk, (((0,), (0,)), ((), ())),
                               preferred_element_type=jnp.float32)      # (Kp, 128)
        vlad = vlad - asum[:, :1] * c_ref[...]

        # Intra-normalization (per cluster over C); padded rows stay zero.
        inorm = jnp.sum(vlad * vlad, axis=-1, keepdims=True)
        vlad = vlad * lax.rsqrt(jnp.maximum(inorm, 1e-24))
        # Global L2 norm of the flattened (K*C,) vector is exactly sqrt(K)
        # after intra-norm, so scale by the constant 1/sqrt(K).
        # TODO(synk): assumes no cluster aggregates to an exactly-zero row.
        o_ref[0] = vlad[:K, :] * inv_sqrt_k

    invariant = pl.Buffered(buffer_count=1)   # single-buffer grid-invariant blocks
    vlad = pl.pallas_call(
        kernel,
        out_shape=jax.ShapeDtypeStruct((N, K, Cout), jnp.float32),
        grid=(N,),
        in_specs=[
            pl.BlockSpec((1, H + 2, W + 2, Cin), lambda n: (n, 0, 0, 0)),
            pl.BlockSpec((9 * Cin, Cout), lambda n: (0, 0), pipeline_mode=invariant),
            pl.BlockSpec((1, Cout), lambda n: (0, 0), pipeline_mode=invariant),
            pl.BlockSpec((Cout, Kp), lambda n: (0, 0), pipeline_mode=invariant),
            pl.BlockSpec((Kp, Cout), lambda n: (0, 0), pipeline_mode=invariant),
        ],
        # NOTE: at production ENC_DIM=512 the (K, C) output rows are lane-dense;
        # at toy C=64 the stores are partially masked, which only matters for
        # small-shape benchmarking.
        out_specs=pl.BlockSpec((1, K, Cout), lambda n: (n, 0, 0)),
        compiler_params=pltpu.CompilerParams(
            dimension_semantics=("parallel",)),
    )(xp, w_col, bias, w_pad, c_pad)
    return vlad.reshape(N, K * Cout)


if __name__ == "__main__":
    key = jax.random.PRNGKey(0)
    k1, k2, k3, k4, k5 = jax.random.split(key, 5)

    # Small shapes (real model: ENCODER_DIM['vgg16']=512, num_clusters=64).
    N, H, W, Cin = 2, 16, 16, 3
    ENC_DIM = 64   # scaled-down encoder dim
    K = 8          # scaled-down number of NetVLAD clusters

    img = jax.random.normal(k1, (N, H, W, Cin), jnp.float32)
    w_conv = jax.random.normal(k2, (3, 3, Cin, ENC_DIM), jnp.float32) * 0.1
    b_conv = jax.random.normal(k3, (ENC_DIM,), jnp.float32) * 0.01
    w_sa = jax.random.normal(k4, (ENC_DIM, K), jnp.float32) * 0.1    # 1x1 conv, no bias
    centroids = jax.random.uniform(k5, (K, ENC_DIM), jnp.float32)    # torch.rand(K, C)

    out = netvlad_forward(img, w_conv, b_conv, w_sa, centroids)
    out = jax.block_until_ready(out)

    # Pure-JAX f32 reference for sanity checking.
    ref_feat = jax.nn.relu(
        lax.conv_general_dilated(img, w_conv, (1, 1), "SAME",
                                 dimension_numbers=("NHWC", "HWIO", "NHWC"))
        + b_conv)
    xr = ref_feat.reshape(N, H * W, ENC_DIM)
    xr = xr / jnp.maximum(jnp.linalg.norm(xr, axis=-1, keepdims=True), 1e-12)
    ar = jax.nn.softmax(xr @ w_sa, axis=-1)
    vl = (jnp.einsum("npk,npc->nkc", ar, xr)
          - jnp.sum(ar, axis=1)[..., None] * centroids[None])
    vl = vl / jnp.maximum(jnp.linalg.norm(vl, axis=-1, keepdims=True), 1e-12)
    flat = vl.reshape(N, -1)
    ref = flat / jnp.maximum(jnp.linalg.norm(flat, axis=-1, keepdims=True), 1e-12)

    assert out.shape == (N, K * ENC_DIM)
    err = float(jnp.max(jnp.abs(out - ref)))
    assert jnp.allclose(out, ref, atol=3e-2, rtol=3e-2), err
    print("KERNEL_OK")
</pallas_src>

<mosaic_0001>
module attributes {stable_mosaic.version = 11 : i64} {
  func.func @kernel(%arg0: i32, %arg1: memref<1x18x18x3xf32, #tpu.memory_space<vmem>>, %arg2: memref<27x64xbf16, #tpu.memory_space<vmem>>, %arg3: memref<1x64xf32, #tpu.memory_space<vmem>>, %arg4: memref<64x128xbf16, #tpu.memory_space<vmem>>, %arg5: memref<128x64xf32, #tpu.memory_space<vmem>>, %arg6: memref<1x8x64xf32, #tpu.memory_space<vmem>>) attributes {dimension_semantics = [#tpu.dimension_semantics<parallel>], iteration_bounds = array<i64: 2>, scalar_prefetch = 0 : i64, scratch_operands = 0 : i64, tpu.core_type = #tpu.core_type<tc>, window_params = [{transform_indices = @transform_0, window_bounds = array<i64: 1, 18, 18, 3>}, {pipeline_mode = #tpu.pipeline_mode<synchronous>, transform_indices = @transform_1, window_bounds = array<i64: 27, 64>}, {pipeline_mode = #tpu.pipeline_mode<synchronous>, transform_indices = @transform_2, window_bounds = array<i64: 1, 64>}, {pipeline_mode = #tpu.pipeline_mode<synchronous>, transform_indices = @transform_3, window_bounds = array<i64: 64, 128>}, {pipeline_mode = #tpu.pipeline_mode<synchronous>, transform_indices = @transform_4, window_bounds = array<i64: 128, 64>}, {transform_indices = @transform_5, window_bounds = array<i64: 1, 8, 64>}]} {
    %c0 = arith.constant 0 : index
    %c0_0 = arith.constant 0 : index
    %c0_1 = arith.constant 0 : index
    %c0_2 = arith.constant 0 : index
    %0 = vector.load %arg1[%c0, %c0_0, %c0_1, %c0_2] : memref<1x18x18x3xf32, #tpu.memory_space<vmem>>, vector<1x18x18x3xf32>
    %1 = vector.shape_cast %0 : vector<1x18x18x3xf32> to vector<18x18x3xf32>
    %2 = arith.truncf %1 : vector<18x18x3xf32> to vector<18x18x3xbf16>
    %3 = vector.extract_strided_slice %2 {offsets = [0, 0, 0], sizes = [16, 16, 3], strides = [1, 1, 1]} : vector<18x18x3xbf16> to vector<16x16x3xbf16>
    %4 = vector.shape_cast %3 : vector<16x16x3xbf16> to vector<256x3xbf16>
    %5 = vector.extract_strided_slice %2 {offsets = [0, 1, 0], sizes = [16, 16, 3], strides = [1, 1, 1]} : vector<18x18x3xbf16> to vector<16x16x3xbf16>
    %6 = vector.shape_cast %5 : vector<16x16x3xbf16> to vector<256x3xbf16>
    %7 = vector.extract_strided_slice %2 {offsets = [0, 2, 0], sizes = [16, 16, 3], strides = [1, 1, 1]} : vector<18x18x3xbf16> to vector<16x16x3xbf16>
    %8 = vector.shape_cast %7 : vector<16x16x3xbf16> to vector<256x3xbf16>
    %9 = vector.extract_strided_slice %2 {offsets = [1, 0, 0], sizes = [16, 16, 3], strides = [1, 1, 1]} : vector<18x18x3xbf16> to vector<16x16x3xbf16>
    %10 = vector.shape_cast %9 : vector<16x16x3xbf16> to vector<256x3xbf16>
    %11 = vector.extract_strided_slice %2 {offsets = [1, 1, 0], sizes = [16, 16, 3], strides = [1, 1, 1]} : vector<18x18x3xbf16> to vector<16x16x3xbf16>
    %12 = vector.shape_cast %11 : vector<16x16x3xbf16> to vector<256x3xbf16>
    %13 = vector.extract_strided_slice %2 {offsets = [1, 2, 0], sizes = [16, 16, 3], strides = [1, 1, 1]} : vector<18x18x3xbf16> to vector<16x16x3xbf16>
    %14 = vector.shape_cast %13 : vector<16x16x3xbf16> to vector<256x3xbf16>
    %15 = vector.extract_strided_slice %2 {offsets = [2, 0, 0], sizes = [16, 16, 3], strides = [1, 1, 1]} : vector<18x18x3xbf16> to vector<16x16x3xbf16>
    %16 = vector.shape_cast %15 : vector<16x16x3xbf16> to vector<256x3xbf16>
    %17 = vector.extract_strided_slice %2 {offsets = [2, 1, 0], sizes = [16, 16, 3], strides = [1, 1, 1]} : vector<18x18x3xbf16> to vector<16x16x3xbf16>
    %18 = vector.shape_cast %17 : vector<16x16x3xbf16> to vector<256x3xbf16>
    %19 = vector.extract_strided_slice %2 {offsets = [2, 2, 0], sizes = [16, 16, 3], strides = [1, 1, 1]} : vector<18x18x3xbf16> to vector<16x16x3xbf16>
    %20 = vector.shape_cast %19 : vector<16x16x3xbf16> to vector<256x3xbf16>
    %21 = tpu.concatenate %4, %6, %8, %10, %12, %14, %16, %18, %20 in 1 : vector<256x3xbf16>, vector<256x3xbf16>, vector<256x3xbf16>, vector<256x3xbf16>, vector<256x3xbf16>, vector<256x3xbf16>, vector<256x3xbf16>, vector<256x3xbf16>, vector<256x3xbf16> -> vector<256x27xbf16>
    %c0_3 = arith.constant 0 : index
    %c0_4 = arith.constant 0 : index
    %22 = vector.load %arg2[%c0_3, %c0_4] : memref<27x64xbf16, #tpu.memory_space<vmem>>, vector<27x64xbf16>
    %cst = arith.constant dense<0.000000e+00> : vector<256x64xf32>
    %23 = tpu.matmul %21, %22, %cst {dimension_numbers = #tpu.dot_dimension_numbers<[1], [0], [0], [1], [0, 0, 1, 1], [], []>} : vector<256x27xbf16>, vector<27x64xbf16>, vector<256x64xf32> -> vector<256x64xf32>
    %c0_5 = arith.constant 0 : index
    %c0_6 = arith.constant 0 : index
    %24 = vector.load %arg3[%c0_5, %c0_6] : memref<1x64xf32, #tpu.memory_space<vmem>>, vector<1x64xf32>
    %25 = vector.broadcast %24 : vector<1x64xf32> to vector<256x64xf32>
    %26 = arith.addf %23, %25 : vector<256x64xf32>
    %cst_7 = arith.constant 0.000000e+00 : f32
    %27 = vector.broadcast %cst_7 : f32 to vector<256x64xf32>
    %28 = arith.maximumf %26, %27 : vector<256x64xf32>
    %29 = arith.mulf %28, %28 : vector<256x64xf32>
    %cst_8 = arith.constant dense<0.000000e+00> : vector<256xf32>
    %30 = vector.multi_reduction <add>, %29, %cst_8 [1] : vector<256x64xf32> to vector<256xf32>
    %31 = vector.shape_cast %30 : vector<256xf32> to vector<256x1xf32>
    %cst_9 = arith.constant 1.000000e-24 : f32
    %32 = vector.broadcast %cst_9 : f32 to vector<256x1xf32>
    %33 = arith.maximumf %31, %32 : vector<256x1xf32>
    %34 = math.rsqrt %33 : vector<256x1xf32>
    %35 = vector.broadcast %34 : vector<256x1xf32> to vector<256x64xf32>
    %36 = arith.mulf %28, %35 : vector<256x64xf32>
    %37 = arith.truncf %36 : vector<256x64xf32> to vector<256x64xbf16>
    %c0_10 = arith.constant 0 : index
    %c0_11 = arith.constant 0 : index
    %38 = vector.load %arg4[%c0_10, %c0_11] : memref<64x128xbf16, #tpu.memory_space<vmem>>, vector<64x128xbf16>
    %cst_12 = arith.constant dense<0.000000e+00> : vector<256x128xf32>
    %39 = tpu.matmul %37, %38, %cst_12 {dimension_numbers = #tpu.dot_dimension_numbers<[1], [0], [0], [1], [0, 0, 1, 1], [], []>} : vector<256x64xbf16>, vector<64x128xbf16>, vector<256x128xf32> -> vector<256x128xf32>
    %cst_13 = arith.constant dense<0xFF800000> : vector<256xf32>
    %40 = vector.multi_reduction <maximumf>, %39, %cst_13 [1] : vector<256x128xf32> to vector<256xf32>
    %41 = vector.shape_cast %40 : vector<256xf32> to vector<256x1xf32>
    %42 = vector.broadcast %41 : vector<256x1xf32> to vector<256x128xf32>
    %43 = arith.subf %39, %42 : vector<256x128xf32>
    %44 = tpu.iota {dimensions = array<i32: 1>} : vector<256x128xi32>
    %c8_i32 = arith.constant 8 : i32
    %45 = vector.broadcast %c8_i32 : i32 to vector<256x128xi32>
    %46 = arith.cmpi slt, %44, %45 : vector<256x128xi32>
    %47 = math.exp %43 : vector<256x128xf32>
    %cst_14 = arith.constant 0.000000e+00 : f32
    %48 = vector.broadcast %cst_14 : f32 to vector<256x128xf32>
    %49 = arith.select %46, %47, %48 : vector<256x128xi1>, vector<256x128xf32>
    %cst_15 = arith.constant dense<0.000000e+00> : vector<256xf32>
    %50 = vector.multi_reduction <add>, %49, %cst_15 [1] : vector<256x128xf32> to vector<256xf32>
    %51 = vector.shape_cast %50 : vector<256xf32> to vector<256x1xf32>
    %52 = tpu.reciprocal %51 {approx = true} : vector<256x1xf32> -> vector<256x1xf32>
    %53 = vector.broadcast %52 : vector<256x1xf32> to vector<256x128xf32>
    %54 = arith.mulf %49, %53 : vector<256x128xf32>
    %55 = arith.truncf %54 : vector<256x128xf32> to vector<256x128xbf16>
    %cst_16 = arith.constant dense<0.000000e+00> : vector<128x64xf32>
    %56 = tpu.matmul %55, %37, %cst_16 {dimension_numbers = #tpu.dot_dimension_numbers<[0], [0], [1], [1], [0, 1, 1, 1], [], []>} : vector<256x128xbf16>, vector<256x64xbf16>, vector<128x64xf32> -> vector<128x64xf32>
    %cst_17 = arith.constant 1.000000e+00 : bf16
    %57 = vector.broadcast %cst_17 : bf16 to vector<256x128xbf16>
    %cst_18 = arith.constant dense<0.000000e+00> : vector<128x128xf32>
    %58 = tpu.matmul %55, %57, %cst_18 {dimension_numbers = #tpu.dot_dimension_numbers<[0], [0], [1], [1], [0, 1, 1, 1], [], []>} : vector<256x128xbf16>, vector<256x128xbf16>, vector<128x128xf32> -> vector<128x128xf32>
    %59 = vector.extract_strided_slice %58 {offsets = [0, 0], sizes = [128, 1], strides = [1, 1]} : vector<128x128xf32> to vector<128x1xf32>
    %c0_19 = arith.constant 0 : index
    %c0_20 = arith.constant 0 : index
    %60 = vector.load %arg5[%c0_19, %c0_20] : memref<128x64xf32, #tpu.memory_space<vmem>>, vector<128x64xf32>
    %61 = vector.broadcast %59 : vector<128x1xf32> to vector<128x64xf32>
    %62 = arith.mulf %61, %60 : vector<128x64xf32>
    %63 = arith.subf %56, %62 : vector<128x64xf32>
    %64 = arith.mulf %63, %63 : vector<128x64xf32>
    %cst_21 = arith.constant dense<0.000000e+00> : vector<128xf32>
    %65 = vector.multi_reduction <add>, %64, %cst_21 [1] : vector<128x64xf32> to vector<128xf32>
    %66 = vector.shape_cast %65 : vector<128xf32> to vector<128x1xf32>
    %cst_22 = arith.constant 1.000000e-24 : f32
    %67 = vector.broadcast %cst_22 : f32 to vector<128x1xf32>
    %68 = arith.maximumf %66, %67 : vector<128x1xf32>
    %69 = math.rsqrt %68 : vector<128x1xf32>
    %70 = vector.broadcast %69 : vector<128x1xf32> to vector<128x64xf32>
    %71 = arith.mulf %63, %70 : vector<128x64xf32>
    %72 = vector.extract_strided_slice %71 {offsets = [0, 0], sizes = [8, 64], strides = [1, 1]} : vector<128x64xf32> to vector<8x64xf32>
    %cst_23 = arith.constant 0.353553385 : f32
    %73 = vector.broadcast %cst_23 : f32 to vector<8x64xf32>
    %74 = arith.mulf %72, %73 : vector<8x64xf32>
    %c0_24 = arith.constant 0 : index
    %c0_25 = arith.constant 0 : index
    %c0_26 = arith.constant 0 : index
    %75 = vector.load %arg6[%c0_24, %c0_25, %c0_26] : memref<1x8x64xf32, #tpu.memory_space<vmem>>, vector<1x8x64xf32>
    %76 = vector.shape_cast %75 : vector<1x8x64xf32> to vector<8x64xf32>
    %77 = vector.shape_cast %74 : vector<8x64xf32> to vector<1x8x64xf32>
    tpu.vector_store %arg6[%c0_24, %c0_25, %c0_26], %77 {strides = array<i32>} : memref<1x8x64xf32, #tpu.memory_space<vmem>>, vector<1x8x64xf32>,
    return
  }
  func.func @transform_0(%arg0: i32) -> (i32, i32, i32, i32) {
    %c0_i32 = arith.constant 0 : i32
    %c0_i32_0 = arith.constant 0 : i32
    %c0_i32_1 = arith.constant 0 : i32
    %c0_i32_2 = arith.constant 0 : i32
    return %arg0, %c0_i32, %c0_i32_0, %c0_i32_1 : i32, i32, i32, i32
  }
  func.func @transform_1(%arg0: i32) -> (i32, i32) {
    %c0_i32 = arith.constant 0 : i32
    %c0_i32_0 = arith.constant 0 : i32
    %c0_i32_1 = arith.constant 0 : i32
    return %c0_i32, %c0_i32_0 : i32, i32
  }
  func.func @transform_2(%arg0: i32) -> (i32, i32) {
    %c0_i32 = arith.constant 0 : i32
    %c0_i32_0 = arith.constant 0 : i32
    %c0_i32_1 = arith.constant 0 : i32
    return %c0_i32, %c0_i32_0 : i32, i32
  }
  func.func @transform_3(%arg0: i32) -> (i32, i32) {
    %c0_i32 = arith.constant 0 : i32
    %c0_i32_0 = arith.constant 0 : i32
    %c0_i32_1 = arith.constant 0 : i32
    return %c0_i32, %c0_i32_0 : i32, i32
  }
  func.func @transform_4(%arg0: i32) -> (i32, i32) {
    %c0_i32 = arith.constant 0 : i32
    %c0_i32_0 = arith.constant 0 : i32
    %c0_i32_1 = arith.constant 0 : i32
    return %c0_i32, %c0_i32_0 : i32, i32
  }
  func.func @transform_5(%arg0: i32) -> (i32, i32, i32) {
    %c0_i32 = arith.constant 0 : i32
    %c0_i32_0 = arith.constant 0 : i32
    %c0_i32_1 = arith.constant 0 : i32
    return %arg0, %c0_i32, %c0_i32_0 : i32, i32, i32
  }
}

</mosaic_0001>

<llo_original>
// kernel: tpu_custom_call.1
$region0: #{tpu_custom_call.1}
  #allocation0 [shape = 'u32[]', space=smem, size = 0x4, offset = 0x4, fixed_abs, tag = 'smem constant byte address 0x4 - core index']
  #allocation1 [shape = 'u32[144,128]{1,0:T(1,128)}', space=vmem, size = 0x12000, scoped, tag = 'internal scratch']
  %s0 = inlined_call_operand.vmem [shape: f32[2,18,18,3], index: 0, kind: input, shape index: {}]
  %s1 = inlined_call_operand.vmem [shape: bf16[27,64], index: 1, kind: input, shape index: {}]
  %s2 = inlined_call_operand.vmem [shape: f32[1,64], index: 2, kind: input, shape index: {}]
  %s3 = inlined_call_operand.vmem [shape: bf16[64,128], index: 3, kind: input, shape index: {}]
  %s4 = inlined_call_operand.vmem [shape: f32[128,64], index: 4, kind: input, shape index: {}]
  %s5 = inlined_call_operand.hbm [shape: f32[2,8,64], index: 5, kind: output, shape index: {}]
  %s6 = sld [smem:[#allocation0]]
  $region53: #{tpu_custom_call.1} parent=0
    _
  %s8 = ssub.s32 1, %s6
  %s9 = scalar_select 0, %s8, %s6
  $region1: #{tpu_custom_call.1} parent=0
    #allocation2 [shape = 'u8[8192]{0}', space=vmem, size = 0x2000, scoped, tag = 'output window, operand 0']
    #allocation3 [shape = 's32[2]{0}', space=sflag, size = 0x8, scoped, tag = 'scoped memory for tpu_custom_call.1']
    %10 = vsyncpa [#allocation3], 0
    %s11 = scalar_lea.sflag [#allocation3], 1
    %12 = vsyncpa %s11, 0
    loop: start=0, step=1, limit=4
    $region2: #{tpu_custom_call.1} parent=1 // loop_pre_header
      _
    $region3: #{tpu_custom_call.1} parent=1 // loop_header
      %s14 = sphi 0, %s18
      %p15 = scmp.ge.s32.totalorder %s14, 4
      %s24 = sphi 0, %s26
      %s27 = sphi 0, %s24
      %s28 = sphi 0, %s27
      %s44 = sphi 0, %s28
      %s48 = sphi 0, %s48
      %s50 = sphi 0, %s48
      %s51 = sphi 0, %s50
      %s65 = sphi 0, %s51
      %s69 = sphi 0, %s69
      %s71 = sphi 0, %s69
      %s72 = sphi 0, %s71
      %s86 = sphi 0, %s72
      %s90 = sphi 0, %s90
      %s92 = sphi 0, %s90
      %s93 = sphi 0, %s92
      %s107 = sphi 0, %s93
      %s111 = sphi 0, %s111
      %s113 = sphi 0, %s111
      %s114 = sphi 0, %s113
      %s128 = sphi 0, %s114
      %s134 = sphi 0, %s136
      %s137 = sphi 0, %s134
      %s138 = sphi 0, %s137
      %s154 = sphi 0, %s138
    $region4: #{tpu_custom_call.1} parent=1 // loop_header_branch
      %17 = sbr.rel (%p15) target = $region8
    $region5: #{tpu_custom_call.1} parent=1 // loop_body
      %s19 = ssub.s32 %s14, 1
      %s20 = ssub.s32 %s14, 2
      %s21 = sadd.s32 %s14, 1
      %s22 = ssub.s32 %s14, %s21
      %p23 = scmp.eq.s32.totalorder %s22, 0
      %s25 = sadd.s32 %s24, 1
      %s26 = scalar_select %p23, %s24, %s25
      %p29 = pneg %p23
      %p30 = scmp.eq.s32.totalorder %s14, 1
      %p31 = por %p29, %p30
      %p32 = scmp.ne.s32.totalorder %s24, %s27
      %p33 = scmp.eq.s32.totalorder %s14, 0
      %p34 = por %p32, %p33
      %p35 = scmp.ne.s32.totalorder %s24, %s27
      %p36 = scmp.eq.s32.totalorder %s19, 1
      %p37 = por %p35, %p36
      %p38 = scmp.ne.s32.totalorder %s27, %s28
      %p39 = scmp.eq.s32.totalorder %s19, 0
      %p40 = por %p38, %p39
      %p41 = scmp.ne.s32.totalorder %s27, %s28
      %p42 = scmp.eq.s32.totalorder %s20, 1
      %p43 = por %p41, %p42
      %p45 = scmp.ne.s32.totalorder %s28, %s44
      %p46 = scmp.eq.s32.totalorder %s20, 0
      %p47 = por %p45, %p46
      %s49 = sadd.s32 %s48, 1
      %p52 = scmp.eq.s32.totalorder %s14, 1
      %p53 = scmp.ne.s32.totalorder %s48, %s50
      %p54 = scmp.eq.s32.totalorder %s14, 0
      %p55 = por %p53, %p54
      %p56 = scmp.ne.s32.totalorder %s48, %s50
      %p57 = scmp.eq.s32.totalorder %s19, 1
      %p58 = por %p56, %p57
      %p59 = scmp.ne.s32.totalorder %s50, %s51
      %p60 = scmp.eq.s32.totalorder %s19, 0
      %p61 = por %p59, %p60
      %p62 = scmp.ne.s32.totalorder %s50, %s51
      %p63 = scmp.eq.s32.totalorder %s20, 1
      %p64 = por %p62, %p63
      %p66 = scmp.ne.s32.totalorder %s51, %s65
      %p67 = scmp.eq.s32.totalorder %s20, 0
      %p68 = por %p66, %p67
      %s70 = sadd.s32 %s69, 1
      %p73 = scmp.eq.s32.totalorder %s14, 1
      %p74 = scmp.ne.s32.totalorder %s69, %s71
      %p75 = scmp.eq.s32.totalorder %s14, 0
      %p76 = por %p74, %p75
      %p77 = scmp.ne.s32.totalorder %s69, %s71
      %p78 = scmp.eq.s32.totalorder %s19, 1
      %p79 = por %p77, %p78
      %p80 = scmp.ne.s32.totalorder %s71, %s72
      %p81 = scmp.eq.s32.totalorder %s19, 0
      %p82 = por %p80, %p81
      %p83 = scmp.ne.s32.totalorder %s71, %s72
      %p84 = scmp.eq.s32.totalorder %s20, 1
      %p85 = por %p83, %p84
      %p87 = scmp.ne.s32.totalorder %s72, %s86
      %p88 = scmp.eq.s32.totalorder %s20, 0
      %p89 = por %p87, %p88
      %s91 = sadd.s32 %s90, 1
      %p94 = scmp.eq.s32.totalorder %s14, 1
      %p95 = scmp.ne.s32.totalorder %s90, %s92
      %p96 = scmp.eq.s32.totalorder %s14, 0
      %p97 = por %p95, %p96
      %p98 = scmp.ne.s32.totalorder %s90, %s92
      %p99 = scmp.eq.s32.totalorder %s19, 1
      %p100 = por %p98, %p99
      %p101 = scmp.ne.s32.totalorder %s92, %s93
      %p102 = scmp.eq.s32.totalorder %s19, 0
      %p103 = por %p101, %p102
      %p104 = scmp.ne.s32.totalorder %s92, %s93
      %p105 = scmp.eq.s32.totalorder %s20, 1
      %p106 = por %p104, %p105
      %p108 = scmp.ne.s32.totalorder %s93, %s107
      %p109 = scmp.eq.s32.totalorder %s20, 0
      %p110 = por %p108, %p109
      %s112 = sadd.s32 %s111, 1
      %p115 = scmp.eq.s32.totalorder %s14, 1
      %p116 = scmp.ne.s32.totalorder %s111, %s113
      %p117 = scmp.eq.s32.totalorder %s14, 0
      %p118 = por %p116, %p117
      %p119 = scmp.ne.s32.totalorder %s111, %s113
      %p120 = scmp.eq.s32.totalorder %s19, 1
      %p121 = por %p119, %p120
      %p122 = scmp.ne.s32.totalorder %s113, %s114
      %p123 = scmp.eq.s32.totalorder %s19, 0
      %p124 = por %p122, %p123
      %p125 = scmp.ne.s32.totalorder %s113, %s114
      %p126 = scmp.eq.s32.totalorder %s20, 1
      %p127 = por %p125, %p126
      %p129 = scmp.ne.s32.totalorder %s114, %s128
      %p130 = scmp.eq.s32.totalorder %s20, 0
      %p131 = por %p129, %p130
      %s132 = ssub.s32 %s14, %s21
      %p133 = scmp.eq.s32.totalorder %s132, 0
      %s135 = sadd.s32 %s134, 1
      %s136 = scalar_select %p133, %s134, %s135
      %p139 = pneg %p133
      %p140 = scmp.eq.s32.totalorder %s14, 1
      %p141 = por %p139, %p140
      %p142 = scmp.ne.s32.totalorder %s134, %s137
      %p143 = scmp.eq.s32.totalorder %s14, 0
      %p144 = por %p142, %p143
      %p145 = scmp.ne.s32.totalorder %s134, %s137
      %p146 = scmp.eq.s32.totalorder %s19, 1
      %p147 = por %p145, %p146
      %p148 = scmp.ne.s32.totalorder %s137, %s138
      %p149 = scmp.eq.s32.totalorder %s19, 0
      %p150 = por %p148, %p149
      %p151 = scmp.ne.s32.totalorder %s137, %s138
      %p152 = scmp.eq.s32.totalorder %s20, 1
      %p153 = por %p151, %p152
      %p155 = scmp.ne.s32.totalorder %s138, %s154
      %p156 = scmp.eq.s32.totalorder %s20, 0
      %p157 = por %p155, %p156
      %p158 = scmp.le.s32.totalorder 1, %s14
      %p159 = scmp.lt.s32.totalorder %s14, 3
      %p160 = pnand %p158, %p159
      %p161 = pneg %p160
      // Predicated region
      $region9: #{tpu_custom_call.1} parent=5 // pred_check
        _
      $region10: #{tpu_custom_call.1} parent=5 // pred_check_branch
        %163 = sbr.rel (%p160) target = $region12
      $region11: #{tpu_custom_call.1} parent=5 // pred_region
        %s164 = ssub.s32 %s14, 1
        // Predicated region
        $region13: #{tpu_custom_call.1} parent=11 // pred_check
          %p165 = pneg %p61
        $region14: #{tpu_custom_call.1} parent=11 // pred_check_branch
          %167 = sbr.rel (%p165) target = $region16
        $region15: #{tpu_custom_call.1} parent=11 // pred_region
          _
        $region16: #{tpu_custom_call.1} parent=11 // pred_fallthru
          _
        // Predicated region
        $region17: #{tpu_custom_call.1} parent=11 // pred_check
          %p168 = pneg %p82
        $region18: #{tpu_custom_call.1} parent=11 // pred_check_branch
          %170 = sbr.rel (%p168) target = $region20
        $region19: #{tpu_custom_call.1} parent=11 // pred_region
          _
        $region20: #{tpu_custom_call.1} parent=11 // pred_fallthru
          _
        // Predicated region
        $region21: #{tpu_custom_call.1} parent=11 // pred_check
          %p171 = pneg %p103
        $region22: #{tpu_custom_call.1} parent=11 // pred_check_branch
          %173 = sbr.rel (%p171) target = $region24
        $region23: #{tpu_custom_call.1} parent=11 // pred_region
          _
        $region24: #{tpu_custom_call.1} parent=11 // pred_fallthru
          _
        // Predicated region
        $region25: #{tpu_custom_call.1} parent=11 // pred_check
          %p174 = pneg %p124
        $region26: #{tpu_custom_call.1} parent=11 // pred_check_branch
          %176 = sbr.rel (%p174) target = $region28
        $region27: #{tpu_custom_call.1} parent=11 // pred_region
          _
        $region28: #{tpu_custom_call.1} parent=11 // pred_fallthru
          _
      $region12: #{tpu_custom_call.1} parent=5 // pred_fallthru
        _
      %p177 = scmp.lt.s32.totalorder %s14, 2
      // Predicated region
      $region29: #{tpu_custom_call.1} parent=5 // pred_check
        %p178 = pneg %p177
      $region30: #{tpu_custom_call.1} parent=5 // pred_check_branch
        %180 = sbr.rel (%p178) target = $region32
      $region31: #{tpu_custom_call.1} parent=5 // pred_region
        // Predicated region
        $region33: #{tpu_custom_call.1} parent=31 // pred_check
          %p181 = pneg %p34
        $region34: #{tpu_custom_call.1} parent=31 // pred_check_branch
          %183 = sbr.rel (%p181) target = $region36
        $region35: #{tpu_custom_call.1} parent=31 // pred_region
          %p184 = scmp.lt.s32.totalorder %s14, 1
          %s185 = scalar_select %p184, %s14, 1
          %s186 = smul.addr %s185, 54
          %s187 = smul.addr %s186, 8
          %s188 = scalar_lea.vmem %s0, %s187
        $region36: #{tpu_custom_call.1} parent=31 // pred_fallthru
          _
      $region32: #{tpu_custom_call.1} parent=5 // pred_fallthru
        _
      %p189 = scmp.le.s32.totalorder 1, %s14
      %p190 = scmp.lt.s32.totalorder %s14, 3
      %p191 = pnand %p189, %p190
      %p192 = pneg %p191
      // Predicated region
      $region37: #{tpu_custom_call.1} parent=5 // pred_check
        _
      $region38: #{tpu_custom_call.1} parent=5 // pred_check_branch
        %194 = sbr.rel (%p191) target = $region40
      $region39: #{tpu_custom_call.1} parent=5 // pred_region
        %s195 = ssub.s32 %s14, 1
        %p196 = scmp.lt.s32.totalorder %s19, 1
        %s197 = scalar_select %p196, %s19, 1
        %s198 = smul.addr %s197, 54
        %s199 = smul.addr %s198, 8
        %s200 = scalar_lea.vmem %s0, %s199
        %p201 = pneg %p40
        %p202 = pneg %p37
        %p203 = pneg %p61
        %p204 = pneg %p58
        %p205 = pneg %p82
        %p206 = pneg %p79
        %p207 = pneg %p103
        %p208 = pneg %p100
        %p209 = pneg %p124
        %p210 = pneg %p121
        %p211 = pneg %p150
        %p212 = pneg %p147
        %s213 = sand.u32 %s137, 1
        %s214 = scalar_lea.sflag [#allocation3], %s213
        %s215 = sand.u32 %s137, 1
        %s216 = smul.addr %s215, 8
        %s217 = scalar_lea.vmem [#allocation2], %s216
        %p218 = scmp.lt.s32.totalorder %s19, 1
        %s219 = scalar_select %p218, %s19, 1
        %s220 = smul.addr %s219, 54
        %s221 = smul.addr %s220, 8
        %s222 = scalar_lea.vmem %s0, %s221
        %v225 = vld [vmem:[%s222] sm:$0xff]
        %v226 = vld [vmem:[%s222 + $0x8] sm:$0xff]
        %v227 = vld [vmem:[%s222 + $0x10] sm:$0x3]
        %v228 = vld [vmem:[%s222 + $0x18] sm:$0xff]
        %v229 = vld [vmem:[%s222 + $0x20] sm:$0xff]
        %v230 = vld [vmem:[%s222 + $0x28] sm:$0x3]
        %v231 = vld [vmem:[%s222 + $0x30] sm:$0xff]
        %v232 = vld [vmem:[%s222 + $0x38] sm:$0xff]
        %v233 = vld [vmem:[%s222 + $0x40] sm:$0x3]
        %v234 = vld [vmem:[%s222 + $0x48] sm:$0xff]
        %v235 = vld [vmem:[%s222 + $0x50] sm:$0xff]
        %v236 = vld [vmem:[%s222 + $0x58] sm:$0x3]
        %v237 = vld [vmem:[%s222 + $0x60] sm:$0xff]
        %v238 = vld [vmem:[%s222 + $0x68] sm:$0xff]
        %v239 = vld [vmem:[%s222 + $0x70] sm:$0x3]
        %v240 = vld [vmem:[%s222 + $0x78] sm:$0xff]
        %v241 = vld [vmem:[%s222 + $0x80] sm:$0xff]
        %v242 = vld [vmem:[%s222 + $0x88] sm:$0x3]
        %v243 = vld [vmem:[%s222 + $0x90] sm:$0xff]
        %v244 = vld [vmem:[%s222 + $0x98] sm:$0xff]
        %v245 = vld [vmem:[%s222 + $0xa0] sm:$0x3]
        %v246 = vld [vmem:[%s222 + $0xa8] sm:$0xff]
        %v247 = vld [vmem:[%s222 + $0xb0] sm:$0xff]
        %v248 = vld [vmem:[%s222 + $0xb8] sm:$0x3]
        %v249 = vld [vmem:[%s222 + $0xc0] sm:$0xff]
        %v250 = vld [vmem:[%s222 + $0xc8] sm:$0xff]
        %v251 = vld [vmem:[%s222 + $0xd0] sm:$0x3]
        %v252 = vld [vmem:[%s222 + $0xd8] sm:$0xff]
        %v253 = vld [vmem:[%s222 + $0xe0] sm:$0xff]
        %v254 = vld [vmem:[%s222 + $0xe8] sm:$0x3]
        %v255 = vld [vmem:[%s222 + $0xf0] sm:$0xff]
        %v256 = vld [vmem:[%s222 + $0xf8] sm:$0xff]
        %v257 = vld [vmem:[%s222 + $0x100] sm:$0x3]
        %v258 = vld [vmem:[%s222 + $0x108] sm:$0xff]
        %v259 = vld [vmem:[%s222 + $0x110] sm:$0xff]
        %v260 = vld [vmem:[%s222 + $0x118] sm:$0x3]
        %v261 = vld [vmem:[%s222 + $0x120] sm:$0xff]
        %v262 = vld [vmem:[%s222 + $0x128] sm:$0xff]
        %v263 = vld [vmem:[%s222 + $0x130] sm:$0x3]
        %v264 = vld [vmem:[%s222 + $0x138] sm:$0xff]
        %v265 = vld [vmem:[%s222 + $0x140] sm:$0xff]
        %v266 = vld [vmem:[%s222 + $0x148] sm:$0x3]
        %v267 = vld [vmem:[%s222 + $0x150] sm:$0xff]
        %v268 = vld [vmem:[%s222 + $0x158] sm:$0xff]
        %v269 = vld [vmem:[%s222 + $0x160] sm:$0x3]
        %v270 = vld [vmem:[%s222 + $0x168] sm:$0xff]
        %v271 = vld [vmem:[%s222 + $0x170] sm:$0xff]
        %v272 = vld [vmem:[%s222 + $0x178] sm:$0x3]
        %v273 = vld [vmem:[%s222 + $0x180] sm:$0xff]
        %v274 = vld [vmem:[%s222 + $0x188] sm:$0xff]
        %v275 = vld [vmem:[%s222 + $0x190] sm:$0x3]
        %v276 = vld [vmem:[%s222 + $0x198] sm:$0xff]
        %v277 = vld [vmem:[%s222 + $0x1a0] sm:$0xff]
        %v278 = vld [vmem:[%s222 + $0x1a8] sm:$0x3]
        %v279 = vpack.c.bf16 %v226, %v225
        %v280 = vpack.c.bf16 %v227, %v227
        %v281 = vpack.c.bf16 %v229, %v228
        %v282 = vpack.c.bf16 %v230, %v230
        %v283 = vpack.c.bf16 %v232, %v231
        %v284 = vpack.c.bf16 %v233, %v233
        %v285 = vpack.c.bf16 %v235, %v234
        %v286 = vpack.c.bf16 %v236, %v236
        %v287 = vpack.c.bf16 %v238, %v237
        %v288 = vpack.c.bf16 %v239, %v239
        %v289 = vpack.c.bf16 %v241, %v240
        %v290 = vpack.c.bf16 %v242, %v242
        %v291 = vpack.c.bf16 %v244, %v243
        %v292 = vpack.c.bf16 %v245, %v245
        %v293 = vpack.c.bf16 %v247, %v246
        %v294 = vpack.c.bf16 %v248, %v248
        %v295 = vpack.c.bf16 %v250, %v249
        %v296 = vpack.c.bf16 %v251, %v251
        %v297 = vpack.c.bf16 %v253, %v252
        %v298 = vpack.c.bf16 %v254, %v254
        %v299 = vpack.c.bf16 %v256, %v255
        %v300 = vpack.c.bf16 %v257, %v257
        %v301 = vpack.c.bf16 %v259, %v258
        %v302 = vpack.c.bf16 %v260, %v260
        %v303 = vpack.c.bf16 %v262, %v261
        %v304 = vpack.c.bf16 %v263, %v263
        %v305 = vpack.c.bf16 %v265, %v264
        %v306 = vpack.c.bf16 %v266, %v266
        %v307 = vpack.c.bf16 %v268, %v267
        %v308 = vpack.c.bf16 %v269, %v269
        %v309 = vpack.c.bf16 %v271, %v270
        %v310 = vpack.c.bf16 %v272, %v272
        %v311 = vpack.c.bf16 %v274, %v273
        %v312 = vpack.c.bf16 %v275, %v275
        %v313 = vpack.c.bf16 %v277, %v276
        %v314 = vpack.c.bf16 %v278, %v278
        %vm315 = vsmask.f32 7424
        %v317 = vshrl.u32 %v279, 16
        %v319 = vshll.u32 %v279, 16
        %v321 = vrot.slane %v319, 1
        %v322 = vor.u32 %v317, %v321
        %v324 = vshll.u32 %v280, 16
        %v326 = vrot.slane %v324, 1
        %v327 = vsel %vm315, %v322, %v326
        %v329 = vshrl.u32 %v281, 16
        %v331 = vshll.u32 %v281, 16
        %v333 = vrot.slane %v331, 1
        %v334 = vor.u32 %v329, %v333
        %v336 = vshll.u32 %v282, 16
        %v338 = vrot.slane %v336, 1
        %v339 = vsel %vm315, %v334, %v338
        %v341 = vshrl.u32 %v283, 16
        %v343 = vshll.u32 %v283, 16
        %v345 = vrot.slane %v343, 1
        %v346 = vor.u32 %v341, %v345
        %v348 = vshll.u32 %v284, 16
        %v350 = vrot.slane %v348, 1
        %v351 = vsel %vm315, %v346, %v350
        %v353 = vshrl.u32 %v285, 16
        %v355 = vshll.u32 %v285, 16
        %v357 = vrot.slane %v355, 1
        %v358 = vor.u32 %v353, %v357
        %v360 = vshll.u32 %v286, 16
        %v362 = vrot.slane %v360, 1
        %v363 = vsel %vm315, %v358, %v362
        %v365 = vshrl.u32 %v287, 16
        %v367 = vshll.u32 %v287, 16
        %v369 = vrot.slane %v367, 1
        %v370 = vor.u32 %v365, %v369
        %v372 = vshll.u32 %v288, 16
        %v374 = vrot.slane %v372, 1
        %v375 = vsel %vm315, %v370, %v374
        %v377 = vshrl.u32 %v289, 16
        %v379 = vshll.u32 %v289, 16
        %v381 = vrot.slane %v379, 1
        %v382 = vor.u32 %v377, %v381
        %v384 = vshll.u32 %v290, 16
        %v386 = vrot.slane %v384, 1
        %v387 = vsel %vm315, %v382, %v386
        %v389 = vshrl.u32 %v291, 16
        %v391 = vshll.u32 %v291, 16
        %v393 = vrot.slane %v391, 1
        %v394 = vor.u32 %v389, %v393
        %v396 = vshll.u32 %v292, 16
        %v398 = vrot.slane %v396, 1
        %v399 = vsel %vm315, %v394, %v398
        %v401 = vshrl.u32 %v293, 16
        %v403 = vshll.u32 %v293, 16
        %v405 = vrot.slane %v403, 1
        %v406 = vor.u32 %v401, %v405
        %v408 = vshll.u32 %v294, 16
        %v410 = vrot.slane %v408, 1
        %v411 = vsel %vm315, %v406, %v410
        %v413 = vshrl.u32 %v295, 16
        %v415 = vshll.u32 %v295, 16
        %v417 = vrot.slane %v415, 1
        %v418 = vor.u32 %v413, %v417
        %v420 = vshll.u32 %v296, 16
        %v422 = vrot.slane %v420, 1
        %v423 = vsel %vm315, %v418, %v422
        %v425 = vshrl.u32 %v297, 16
        %v427 = vshll.u32 %v297, 16
        %v429 = vrot.slane %v427, 1
        %v430 = vor.u32 %v425, %v429
        %v432 = vshll.u32 %v298, 16
        %v434 = vrot.slane %v432, 1
        %v435 = vsel %vm315, %v430, %v434
        %v437 = vshrl.u32 %v299, 16
        %v439 = vshll.u32 %v299, 16
        %v441 = vrot.slane %v439, 1
        %v442 = vor.u32 %v437, %v441
        %v444 = vshll.u32 %v300, 16
        %v446 = vrot.slane %v444, 1
        %v447 = vsel %vm315, %v442, %v446
        %v449 = vshrl.u32 %v301, 16
        %v451 = vshll.u32 %v301, 16
        %v453 = vrot.slane %v451, 1
        %v454 = vor.u32 %v449, %v453
        %v456 = vshll.u32 %v302, 16
        %v458 = vrot.slane %v456, 1
        %v459 = vsel %vm315, %v454, %v458
        %v461 = vshrl.u32 %v303, 16
        %v463 = vshll.u32 %v303, 16
        %v465 = vrot.slane %v463, 1
        %v466 = vor.u32 %v461, %v465
        %v468 = vshll.u32 %v304, 16
        %v470 = vrot.slane %v468, 1
        %v471 = vsel %vm315, %v466, %v470
        %v473 = vshrl.u32 %v305, 16
        %v475 = vshll.u32 %v305, 16
        %v477 = vrot.slane %v475, 1
        %v478 = vor.u32 %v473, %v477
        %v480 = vshll.u32 %v306, 16
        %v482 = vrot.slane %v480, 1
        %v483 = vsel %vm315, %v478, %v482
        %v485 = vshrl.u32 %v307, 16
        %v487 = vshll.u32 %v307, 16
        %v489 = vrot.slane %v487, 1
        %v490 = vor.u32 %v485, %v489
        %v492 = vshll.u32 %v308, 16
        %v494 = vrot.slane %v492, 1
        %v495 = vsel %vm315, %v490, %v494
        %v497 = vshrl.u32 %v309, 16
        %v499 = vshll.u32 %v309, 16
        %v501 = vrot.slane %v499, 1
        %v502 = vor.u32 %v497, %v501
        %v504 = vshll.u32 %v310, 16
        %v506 = vrot.slane %v504, 1
        %v507 = vsel %vm315, %v502, %v506
        %vm540 = vcmask 1046528
        %v541 = vrot.slane %v279, 1
        %v542 = vrot.slane %v280, 1
        %v543 = vsel %vm540, %v541, %v542
        %v544 = vrot.slane %v281, 1
        %v545 = vrot.slane %v282, 1
        %v546 = vsel %vm540, %v544, %v545
        %v547 = vrot.slane %v283, 1
        %v548 = vrot.slane %v284, 1
        %v549 = vsel %vm540, %v547, %v548
        %v550 = vrot.slane %v285, 1
        %v551 = vrot.slane %v286, 1
        %v552 = vsel %vm540, %v550, %v551
        %v553 = vrot.slane %v287, 1
        %v554 = vrot.slane %v288, 1
        %v555 = vsel %vm540, %v553, %v554
        %v556 = vrot.slane %v289, 1
        %v557 = vrot.slane %v290, 1
        %v558 = vsel %vm540, %v556, %v557
        %v559 = vrot.slane %v291, 1
        %v560 = vrot.slane %v292, 1
        %v561 = vsel %vm540, %v559, %v560
        %v562 = vrot.slane %v293, 1
        %v563 = vrot.slane %v294, 1
        %v564 = vsel %vm540, %v562, %v563
        %v565 = vrot.slane %v295, 1
        %v566 = vrot.slane %v296, 1
        %v567 = vsel %vm540, %v565, %v566
        %v568 = vrot.slane %v297, 1
        %v569 = vrot.slane %v298, 1
        %v570 = vsel %vm540, %v568, %v569
        %v571 = vrot.slane %v299, 1
        %v572 = vrot.slane %v300, 1
        %v573 = vsel %vm540, %v571, %v572
        %v574 = vrot.slane %v301, 1
        %v575 = vrot.slane %v302, 1
        %v576 = vsel %vm540, %v574, %v575
        %v577 = vrot.slane %v303, 1
        %v578 = vrot.slane %v304, 1
        %v579 = vsel %vm540, %v577, %v578
        %v580 = vrot.slane %v305, 1
        %v581 = vrot.slane %v306, 1
        %v582 = vsel %vm540, %v580, %v581
        %v583 = vrot.slane %v307, 1
        %v584 = vrot.slane %v308, 1
        %v585 = vsel %vm540, %v583, %v584
        %v586 = vrot.slane %v309, 1
        %v587 = vrot.slane %v310, 1
        %v588 = vsel %vm540, %v586, %v587
        %v590 = vshrl.u32 %v311, 16
        %v592 = vshll.u32 %v311, 16
        %v594 = vrot.slane %v592, 1
        %v595 = vor.u32 %v590, %v594
        %v597 = vshll.u32 %v312, 16
        %v599 = vrot.slane %v597, 1
        %v600 = vsel %vm315, %v595, %v599
        %v603 = vrot.slane %v311, 1
        %v604 = vrot.slane %v312, 1
        %v605 = vsel %vm540, %v603, %v604
        %v607 = vshrl.u32 %v313, 16
        %v609 = vshll.u32 %v313, 16
        %v611 = vrot.slane %v609, 1
        %v612 = vor.u32 %v607, %v611
        %v614 = vshll.u32 %v314, 16
        %v616 = vrot.slane %v614, 1
        %v617 = vsel %vm315, %v612, %v616
        %v620 = vrot.slane %v313, 1
        %v621 = vrot.slane %v314, 1
        %v622 = vsel %vm540, %v620, %v621
        %623 = vrot.lane.b32.xlu0 %v327, 3
        %v624 = vpop.permute.xlu0 %623
        %625 = vrot.lane.b32.xlu0 %v339, 3
        %v626 = vpop.permute.xlu0 %625
        %627 = vrot.lane.b32.xlu0 %v351, 3
        %v628 = vpop.permute.xlu0 %627
        %629 = vrot.lane.b32.xlu0 %v363, 3
        %v630 = vpop.permute.xlu0 %629
        %631 = vrot.lane.b32.xlu0 %v375, 3
        %v632 = vpop.permute.xlu0 %631
        %633 = vrot.lane.b32.xlu0 %v387, 3
        %v634 = vpop.permute.xlu0 %633
        %635 = vrot.lane.b32.xlu0 %v399, 3
        %v636 = vpop.permute.xlu0 %635
        %637 = vrot.lane.b32.xlu0 %v411, 3
        %v638 = vpop.permute.xlu0 %637
        %639 = vrot.lane.b32.xlu0 %v423, 3
        %v640 = vpop.permute.xlu0 %639
        %641 = vrot.lane.b32.xlu0 %v435, 3
        %v642 = vpop.permute.xlu0 %641
        %643 = vrot.lane.b32.xlu0 %v447, 3
        %v644 = vpop.permute.xlu0 %643
        %645 = vrot.lane.b32.xlu0 %v459, 3
        %v646 = vpop.permute.xlu0 %645
        %647 = vrot.lane.b32.xlu0 %v471, 3
        %v648 = vpop.permute.xlu0 %647
        %649 = vrot.lane.b32.xlu0 %v483, 3
        %v650 = vpop.permute.xlu0 %649
        %651 = vrot.lane.b32.xlu0 %v495, 3
        %v652 = vpop.permute.xlu0 %651
        %653 = vrot.lane.b32.xlu0 %v507, 3
        %v654 = vpop.permute.xlu0 %653
        %655 = vrot.lane.b32.xlu0 %v543, 6
        %v656 = vpop.permute.xlu0 %655
        %657 = vrot.lane.b32.xlu0 %v546, 6
        %v658 = vpop.permute.xlu0 %657
        %659 = vrot.lane.b32.xlu0 %v549, 6
        %v660 = vpop.permute.xlu0 %659
        %661 = vrot.lane.b32.xlu0 %v552, 6
        %v662 = vpop.permute.xlu0 %661
        %663 = vrot.lane.b32.xlu0 %v555, 6
        %v664 = vpop.permute.xlu0 %663
        %665 = vrot.lane.b32.xlu0 %v558, 6
        %v666 = vpop.permute.xlu0 %665
        %667 = vrot.lane.b32.xlu0 %v561, 6
        %v668 = vpop.permute.xlu0 %667
        %669 = vrot.lane.b32.xlu0 %v564, 6
        %v670 = vpop.permute.xlu0 %669
        %671 = vrot.lane.b32.xlu0 %v567, 6
        %v672 = vpop.permute.xlu0 %671
        %673 = vrot.lane.b32.xlu0 %v570, 6
        %v674 = vpop.permute.xlu0 %673
        %675 = vrot.lane.b32.xlu0 %v573, 6
        %v676 = vpop.permute.xlu0 %675
        %677 = vrot.lane.b32.xlu0 %v576, 6
        %v678 = vpop.permute.xlu0 %677
        %679 = vrot.lane.b32.xlu0 %v579, 6
        %v680 = vpop.permute.xlu0 %679
        %681 = vrot.lane.b32.xlu0 %v582, 6
        %v682 = vpop.permute.xlu0 %681
        %683 = vrot.lane.b32.xlu0 %v585, 6
        %v684 = vpop.permute.xlu0 %683
        %685 = vrot.lane.b32.xlu0 %v588, 6
        %v686 = vpop.permute.xlu0 %685
        %687 = vrot.lane.b32.xlu0 %v281, 9
        %v688 = vpop.permute.xlu0 %687
        %689 = vrot.lane.b32.xlu0 %v283, 9
        %v690 = vpop.permute.xlu0 %689
        %691 = vrot.lane.b32.xlu0 %v285, 9
        %v692 = vpop.permute.xlu0 %691
        %693 = vrot.lane.b32.xlu0 %v287, 9
        %v694 = vpop.permute.xlu0 %693
        %695 = vrot.lane.b32.xlu0 %v289, 9
        %v696 = vpop.permute.xlu0 %695
        %697 = vrot.lane.b32.xlu0 %v291, 9
        %v698 = vpop.permute.xlu0 %697
        %699 = vrot.lane.b32.xlu0 %v293, 9
        %v700 = vpop.permute.xlu0 %699
        %701 = vrot.lane.b32.xlu0 %v295, 9
        %v702 = vpop.permute.xlu0 %701
        %703 = vrot.lane.b32.xlu0 %v297, 9
        %v704 = vpop.permute.xlu0 %703
        %705 = vrot.lane.b32.xlu0 %v299, 9
        %v706 = vpop.permute.xlu0 %705
        %707 = vrot.lane.b32.xlu0 %v301, 9
        %v708 = vpop.permute.xlu0 %707
        %709 = vrot.lane.b32.xlu0 %v303, 9
        %v710 = vpop.permute.xlu0 %709
        %711 = vrot.lane.b32.xlu0 %v305, 9
        %v712 = vpop.permute.xlu0 %711
        %713 = vrot.lane.b32.xlu0 %v307, 9
        %v714 = vpop.permute.xlu0 %713
        %715 = vrot.lane.b32.xlu0 %v309, 9
        %v716 = vpop.permute.xlu0 %715
        %717 = vrot.lane.b32.xlu0 %v311, 9
        %v718 = vpop.permute.xlu0 %717
        %719 = vrot.lane.b32.xlu0 %v339, 12
        %v720 = vpop.permute.xlu0 %719
        %721 = vrot.lane.b32.xlu0 %v351, 12
        %v722 = vpop.permute.xlu0 %721
        %723 = vrot.lane.b32.xlu0 %v363, 12
        %v724 = vpop.permute.xlu0 %723
        %725 = vrot.lane.b32.xlu0 %v375, 12
        %v726 = vpop.permute.xlu0 %725
        %727 = vrot.lane.b32.xlu0 %v387, 12
        %v728 = vpop.permute.xlu0 %727
        %729 = vrot.lane.b32.xlu0 %v399, 12
        %v730 = vpop.permute.xlu0 %729
        %731 = vrot.lane.b32.xlu0 %v411, 12
        %v732 = vpop.permute.xlu0 %731
        %733 = vrot.lane.b32.xlu0 %v423, 12
        %v734 = vpop.permute.xlu0 %733
        %735 = vrot.lane.b32.xlu0 %v435, 12
        %v736 = vpop.permute.xlu0 %735
        %737 = vrot.lane.b32.xlu0 %v447, 12
        %v738 = vpop.permute.xlu0 %737
        %739 = vrot.lane.b32.xlu0 %v459, 12
        %v740 = vpop.permute.xlu0 %739
        %741 = vrot.lane.b32.xlu0 %v471, 12
        %v742 = vpop.permute.xlu0 %741
        %743 = vrot.lane.b32.xlu0 %v483, 12
        %v744 = vpop.permute.xlu0 %743
        %745 = vrot.lane.b32.xlu0 %v495, 12
        %v746 = vpop.permute.xlu0 %745
        %747 = vrot.lane.b32.xlu0 %v507, 12
        %v748 = vpop.permute.xlu0 %747
        %749 = vrot.lane.b32.xlu0 %v600, 12
        %v750 = vpop.permute.xlu0 %749
        %751 = vrot.lane.b32.xlu0 %v546, 15
        %v752 = vpop.permute.xlu0 %751
        %753 = vrot.lane.b32.xlu0 %v549, 15
        %v754 = vpop.permute.xlu0 %753
        %755 = vrot.lane.b32.xlu0 %v552, 15
        %v756 = vpop.permute.xlu0 %755
        %757 = vrot.lane.b32.xlu0 %v555, 15
        %v758 = vpop.permute.xlu0 %757
        %759 = vrot.lane.b32.xlu0 %v558, 15
        %v760 = vpop.permute.xlu0 %759
        %761 = vrot.lane.b32.xlu0 %v561, 15
        %v762 = vpop.permute.xlu0 %761
        %763 = vrot.lane.b32.xlu0 %v564, 15
        %v764 = vpop.permute.xlu0 %763
        %765 = vrot.lane.b32.xlu0 %v567, 15
        %v766 = vpop.permute.xlu0 %765
        %767 = vrot.lane.b32.xlu0 %v570, 15
        %v768 = vpop.permute.xlu0 %767
        %769 = vrot.lane.b32.xlu0 %v573, 15
        %v770 = vpop.permute.xlu0 %769
        %771 = vrot.lane.b32.xlu0 %v576, 15
        %v772 = vpop.permute.xlu0 %771
        %773 = vrot.lane.b32.xlu0 %v579, 15
        %v774 = vpop.permute.xlu0 %773
        %775 = vrot.lane.b32.xlu0 %v582, 15
        %v776 = vpop.permute.xlu0 %775
        %777 = vrot.lane.b32.xlu0 %v585, 15
        %v778 = vpop.permute.xlu0 %777
        %779 = vrot.lane.b32.xlu0 %v588, 15
        %v780 = vpop.permute.xlu0 %779
        %781 = vrot.lane.b32.xlu0 %v605, 15
        %v782 = vpop.permute.xlu0 %781
        %783 = vrot.lane.b32.xlu0 %v283, 18
        %v784 = vpop.permute.xlu0 %783
        %785 = vrot.lane.b32.xlu0 %v285, 18
        %v786 = vpop.permute.xlu0 %785
        %787 = vrot.lane.b32.xlu0 %v287, 18
        %v788 = vpop.permute.xlu0 %787
        %789 = vrot.lane.b32.xlu0 %v289, 18
        %v790 = vpop.permute.xlu0 %789
        %791 = vrot.lane.b32.xlu0 %v291, 18
        %v792 = vpop.permute.xlu0 %791
        %793 = vrot.lane.b32.xlu0 %v293, 18
        %v794 = vpop.permute.xlu0 %793
        %795 = vrot.lane.b32.xlu0 %v295, 18
        %v796 = vpop.permute.xlu0 %795
        %797 = vrot.lane.b32.xlu0 %v297, 18
        %v798 = vpop.permute.xlu0 %797
        %799 = vrot.lane.b32.xlu0 %v299, 18
        %v800 = vpop.permute.xlu0 %799
        %801 = vrot.lane.b32.xlu0 %v301, 18
        %v802 = vpop.permute.xlu0 %801
        %803 = vrot.lane.b32.xlu0 %v303, 18
        %v804 = vpop.permute.xlu0 %803
        %805 = vrot.lane.b32.xlu0 %v305, 18
        %v806 = vpop.permute.xlu0 %805
        %807 = vrot.lane.b32.xlu0 %v307, 18
        %v808 = vpop.permute.xlu0 %807
        %809 = vrot.lane.b32.xlu0 %v309, 18
        %v810 = vpop.permute.xlu0 %809
        %811 = vrot.lane.b32.xlu0 %v311, 18
        %v812 = vpop.permute.xlu0 %811
        %813 = vrot.lane.b32.xlu0 %v313, 18
        %v814 = vpop.permute.xlu0 %813
        %815 = vrot.lane.b32.xlu0 %v351, 21
        %v816 = vpop.permute.xlu0 %815
        %817 = vrot.lane.b32.xlu0 %v363, 21
        %v818 = vpop.permute.xlu0 %817
        %819 = vrot.lane.b32.xlu0 %v375, 21
        %v820 = vpop.permute.xlu0 %819
        %821 = vrot.lane.b32.xlu0 %v387, 21
        %v822 = vpop.permute.xlu0 %821
        %823 = vrot.lane.b32.xlu0 %v399, 21
        %v824 = vpop.permute.xlu0 %823
        %825 = vrot.lane.b32.xlu0 %v411, 21
        %v826 = vpop.permute.xlu0 %825
        %827 = vrot.lane.b32.xlu0 %v423, 21
        %v828 = vpop.permute.xlu0 %827
        %829 = vrot.lane.b32.xlu0 %v435, 21
        %v830 = vpop.permute.xlu0 %829
        %831 = vrot.lane.b32.xlu0 %v447, 21
        %v832 = vpop.permute.xlu0 %831
        %833 = vrot.lane.b32.xlu0 %v459, 21
        %v834 = vpop.permute.xlu0 %833
        %835 = vrot.lane.b32.xlu0 %v471, 21
        %v836 = vpop.permute.xlu0 %835
        %837 = vrot.lane.b32.xlu0 %v483, 21
        %v838 = vpop.permute.xlu0 %837
        %839 = vrot.lane.b32.xlu0 %v495, 21
        %v840 = vpop.permute.xlu0 %839
        %841 = vrot.lane.b32.xlu0 %v507, 21
        %v842 = vpop.permute.xlu0 %841
        %843 = vrot.lane.b32.xlu0 %v600, 21
        %v844 = vpop.permute.xlu0 %843
        %845 = vrot.lane.b32.xlu0 %v617, 21
        %v846 = vpop.permute.xlu0 %845
        %847 = vrot.lane.b32.xlu0 %v549, 24
        %v848 = vpop.permute.xlu0 %847
        %849 = vrot.lane.b32.xlu0 %v552, 24
        %v850 = vpop.permute.xlu0 %849
        %851 = vrot.lane.b32.xlu0 %v555, 24
        %v852 = vpop.permute.xlu0 %851
        %853 = vrot.lane.b32.xlu0 %v558, 24
        %v854 = vpop.permute.xlu0 %853
        %855 = vrot.lane.b32.xlu0 %v561, 24
        %v856 = vpop.permute.xlu0 %855
        %857 = vrot.lane.b32.xlu0 %v564, 24
        %v858 = vpop.permute.xlu0 %857
        %859 = vrot.lane.b32.xlu0 %v567, 24
        %v860 = vpop.permute.xlu0 %859
        %861 = vrot.lane.b32.xlu0 %v570, 24
        %v862 = vpop.permute.xlu0 %861
        %863 = vrot.lane.b32.xlu0 %v573, 24
        %v864 = vpop.permute.xlu0 %863
        %865 = vrot.lane.b32.xlu0 %v576, 24
        %v866 = vpop.permute.xlu0 %865
        %867 = vrot.lane.b32.xlu0 %v579, 24
        %v868 = vpop.permute.xlu0 %867
        %869 = vrot.lane.b32.xlu0 %v582, 24
        %v870 = vpop.permute.xlu0 %869
        %871 = vrot.lane.b32.xlu0 %v585, 24
        %v872 = vpop.permute.xlu0 %871
        %873 = vrot.lane.b32.xlu0 %v588, 24
        %v874 = vpop.permute.xlu0 %873
        %875 = vrot.lane.b32.xlu0 %v605, 24
        %v876 = vpop.permute.xlu0 %875
        %877 = vrot.lane.b32.xlu0 %v622, 24
        %v878 = vpop.permute.xlu0 %877
        %vm879 = vcmask 23552
        %v881 = vsel %vm879, %v279, %v624
        %v883 = vsel %vm879, %v281, %v626
        %v885 = vsel %vm879, %v283, %v628
        %v887 = vsel %vm879, %v285, %v630
        %v889 = vsel %vm879, %v287, %v632
        %v891 = vsel %vm879, %v289, %v634
        %v893 = vsel %vm879, %v291, %v636
        %v895 = vsel %vm879, %v293, %v638
        %v897 = vsel %vm879, %v295, %v640
        %v899 = vsel %vm879, %v297, %v642
        %v901 = vsel %vm879, %v299, %v644
        %v903 = vsel %vm879, %v301, %v646
        %v905 = vsel %vm879, %v303, %v648
        %v907 = vsel %vm879, %v305, %v650
        %v909 = vsel %vm879, %v307, %v652
        %v911 = vsel %vm879, %v309, %v654
        %vm912 = vcmask 48128
        %v914 = vsel %vm912, %v881, %v656
        %v916 = vsel %vm912, %v883, %v658
        %v918 = vsel %vm912, %v885, %v660
        %v920 = vsel %vm912, %v887, %v662
        %v922 = vsel %vm912, %v889, %v664
        %v924 = vsel %vm912, %v891, %v666
        %v926 = vsel %vm912, %v893, %v668
        %v928 = vsel %vm912, %v895, %v670
        %v930 = vsel %vm912, %v897, %v672
        %v932 = vsel %vm912, %v899, %v674
        %v934 = vsel %vm912, %v901, %v676
        %v936 = vsel %vm912, %v903, %v678
        %v938 = vsel %vm912, %v905, %v680
        %v940 = vsel %vm912, %v907, %v682
        %v942 = vsel %vm912, %v909, %v684
        %v944 = vsel %vm912, %v911, %v686
        %vm945 = vcmask 72704
        %v947 = vsel %vm945, %v914, %v688
        %v949 = vsel %vm945, %v916, %v690
        %v951 = vsel %vm945, %v918, %v692
        %v953 = vsel %vm945, %v920, %v694
        %v955 = vsel %vm945, %v922, %v696
        %v957 = vsel %vm945, %v924, %v698
        %v959 = vsel %vm945, %v926, %v700
        %v961 = vsel %vm945, %v928, %v702
        %v963 = vsel %vm945, %v930, %v704
        %v965 = vsel %vm945, %v932, %v706
        %v967 = vsel %vm945, %v934, %v708
        %v969 = vsel %vm945, %v936, %v710
        %v971 = vsel %vm945, %v938, %v712
        %v973 = vsel %vm945, %v940, %v714
        %v975 = vsel %vm945, %v942, %v716
        %v977 = vsel %vm945, %v944, %v718
        %vm978 = vcmask 97280
        %v980 = vsel %vm978, %v947, %v720
        %v982 = vsel %vm978, %v949, %v722
        %v984 = vsel %vm978, %v951, %v724
        %v986 = vsel %vm978, %v953, %v726
        %v988 = vsel %vm978, %v955, %v728
        %v990 = vsel %vm978, %v957, %v730
        %v992 = vsel %vm978, %v959, %v732
        %v994 = vsel %vm978, %v961, %v734
        %v996 = vsel %vm978, %v963, %v736
        %v998 = vsel %vm978, %v965, %v738
        %v1000 = vsel %vm978, %v967, %v740
        %v1002 = vsel %vm978, %v969, %v742
        %v1004 = vsel %vm978, %v971, %v744
        %v1006 = vsel %vm978, %v973, %v746
        %v1008 = vsel %vm978, %v975, %v748
        %v1010 = vsel %vm978, %v977, %v750
        %vm1011 = vcmask 121856
        %v1013 = vsel %vm1011, %v980, %v752
        %v1015 = vsel %vm1011, %v982, %v754
        %v1017 = vsel %vm1011, %v984, %v756
        %v1019 = vsel %vm1011, %v986, %v758
        %v1021 = vsel %vm1011, %v988, %v760
        %v1023 = vsel %vm1011, %v990, %v762
        %v1025 = vsel %vm1011, %v992, %v764
        %v1027 = vsel %vm1011, %v994, %v766
        %v1029 = vsel %vm1011, %v996, %v768
        %v1031 = vsel %vm1011, %v998, %v770
        %v1033 = vsel %vm1011, %v1000, %v772
        %v1035 = vsel %vm1011, %v1002, %v774
        %v1037 = vsel %vm1011, %v1004, %v776
        %v1039 = vsel %vm1011, %v1006, %v778
        %v1041 = vsel %vm1011, %v1008, %v780
        %v1043 = vsel %vm1011, %v1010, %v782
        %vm1044 = vcmask 146432
        %v1046 = vsel %vm1044, %v1013, %v784
        %v1048 = vsel %vm1044, %v1015, %v786
        %v1050 = vsel %vm1044, %v1017, %v788
        %v1052 = vsel %vm1044, %v1019, %v790
        %v1054 = vsel %vm1044, %v1021, %v792
        %v1056 = vsel %vm1044, %v1023, %v794
        %v1058 = vsel %vm1044, %v1025, %v796
        %v1060 = vsel %vm1044, %v1027, %v798
        %v1062 = vsel %vm1044, %v1029, %v800
        %v1064 = vsel %vm1044, %v1031, %v802
        %v1066 = vsel %vm1044, %v1033, %v804
        %v1068 = vsel %vm1044, %v1035, %v806
        %v1070 = vsel %vm1044, %v1037, %v808
        %v1072 = vsel %vm1044, %v1039, %v810
        %v1074 = vsel %vm1044, %v1041, %v812
        %v1076 = vsel %vm1044, %v1043, %v814
        %vm1077 = vcmask 171008
        %v1079 = vsel %vm1077, %v1046, %v816
        %v1081 = vsel %vm1077, %v1048, %v818
        %v1083 = vsel %vm1077, %v1050, %v820
        %v1085 = vsel %vm1077, %v1052, %v822
        %v1087 = vsel %vm1077, %v1054, %v824
        %v1089 = vsel %vm1077, %v1056, %v826
        %v1091 = vsel %vm1077, %v1058, %v828
        %v1093 = vsel %vm1077, %v1060, %v830
        %v1095 = vsel %vm1077, %v1062, %v832
        %v1097 = vsel %vm1077, %v1064, %v834
        %v1099 = vsel %vm1077, %v1066, %v836
        %v1101 = vsel %vm1077, %v1068, %v838
        %v1103 = vsel %vm1077, %v1070, %v840
        %v1105 = vsel %vm1077, %v1072, %v842
        %v1107 = vsel %vm1077, %v1074, %v844
        %v1109 = vsel %vm1077, %v1076, %v846
        %vm1110 = vcmask 195584
        %v1112 = vsel %vm1110, %v1079, %v848
        %v1114 = vsel %vm1110, %v1081, %v850
        %v1116 = vsel %vm1110, %v1083, %v852
        %v1118 = vsel %vm1110, %v1085, %v854
        %v1120 = vsel %vm1110, %v1087, %v856
        %v1122 = vsel %vm1110, %v1089, %v858
        %v1124 = vsel %vm1110, %v1091, %v860
        %v1126 = vsel %vm1110, %v1093, %v862
        %v1128 = vsel %vm1110, %v1095, %v864
        %v1130 = vsel %vm1110, %v1097, %v866
        %v1132 = vsel %vm1110, %v1099, %v868
        %v1134 = vsel %vm1110, %v1101, %v870
        %v1136 = vsel %vm1110, %v1103, %v872
        %v1138 = vsel %vm1110, %v1105, %v874
        %v1140 = vsel %vm1110, %v1107, %v876
        %v1142 = vsel %vm1110, %v1109, %v878
        %v1143 = vld [vmem:[%s1] sm:$0xf]
        %v1144 = vld [vmem:[%s1 + $0x4] sm:$0xf]
        %v1145 = vld [vmem:[%s1 + $0x8] sm:$0xf]
        %v1146 = vld [vmem:[%s1 + $0xc] sm:$0x3]
        %v1147 = vld [vmem:[%s2] sm:$0x1]
        %v1149 = vlaneseq
        %v1150 = vshrl.u32 %v1149, 7
        %v1151 = vsub.s32 0, %v1150
        %v1152 = vrot.slane %v1147, %v1151
        %v1158 = vunpack.c.l.b16 %v1143
        %v1159 = vunpack.c.l.b16 %v1144
        %v1160 = vunpack.c.l.b16 %v1145
        %v1161 = vunpack.c.l.b16 %v1146
        %v1162 = vpack.c.b16 %v1159, %v1158
        %v1163 = vpack.c.b16 %v1161, %v1160
        %vm1165 = vcmask 220160
        %v1166 = vsel %vm1165, %v1112, 0
        %v1168 = vsel %vm1165, %v1114, 0
        %v1170 = vsel %vm1165, %v1116, 0
        %v1172 = vsel %vm1165, %v1118, 0
        %v1174 = vsel %vm1165, %v1120, 0
        %v1176 = vsel %vm1165, %v1122, 0
        %v1178 = vsel %vm1165, %v1124, 0
        %v1180 = vsel %vm1165, %v1126, 0
        %v1182 = vsel %vm1165, %v1128, 0
        %v1184 = vsel %vm1165, %v1130, 0
        %v1186 = vsel %vm1165, %v1132, 0
        %v1188 = vsel %vm1165, %v1134, 0
        %v1190 = vsel %vm1165, %v1136, 0
        %v1192 = vsel %vm1165, %v1138, 0
        %v1194 = vsel %vm1165, %v1140, 0
        %v1196 = vsel %vm1165, %v1142, 0
        %vm1198 = vcmask 1044480
        %vm1199 = vcmask 1045504
        %v1200 = vsel %vm1198, 4294967295, 65535
        %v1201 = vsel %vm1199, %v1200, 0
        %v1203 = vand.u32 %v1163, %v1201
        %1205 = vmatprep.subr.bf16.mxu0 0
        %1206 = vmatpush1.bf16.msra.mxu0 %v1162
        %1207 = vmatprep.subr.bf16.mxu0 0
        %1208 = vmatpush1.bf16.msra.mxu0 %v1203
        %1209 = vmatprep.subr.bf16.mxu0 0
        %1210 = vmatpush1.bf16.msra.mxu0 0
        %1211 = vmatprep.subr.bf16.mxu0 0
        %1212 = vmatpush1.bf16.msra.mxu0 0
        %1213 = vmatprep.subr.bf16.mxu0 0
        %1214 = vmatpush1.bf16.msra.mxu0 0
        %1215 = vmatprep.subr.bf16.mxu0 0
        %1216 = vmatpush1.bf16.msra.mxu0 0
        %1217 = vmatprep.subr.bf16.mxu0 0
        %1218 = vmatpush1.bf16.msra.mxu0 0
        %1219 = vmatprep.subr.bf16.mxu0 0
        %1220 = vmatpush1.bf16.msra.mxu0 0
        %1221 = vmatprep.subr.bf16.mxu0 0
        %1222 = vmatpush1.bf16.msra.mxu0 0
        %1223 = vmatprep.subr.bf16.mxu0 0
        %1224 = vmatpush1.bf16.msra.mxu0 0
        %1225 = vmatprep.subr.bf16.mxu0 0
        %1226 = vmatpush1.bf16.msra.mxu0 0
        %1227 = vmatprep.subr.bf16.mxu0 0
        %1228 = vmatpush1.bf16.msra.mxu0 0
        %1229 = vmatprep.subr.bf16.mxu0 0
        %1230 = vmatpush1.bf16.msra.mxu0 0
        %1231 = vmatprep.subr.bf16.mxu0 0
        %1232 = vmatpush1.bf16.msra.mxu0 0
        %1233 = vmatprep.subr.bf16.mxu0 0
        %1234 = vmatpush1.bf16.msra.mxu0 0
        %1235 = vmatprep.subr.bf16.mxu0 0
        %1236 = vmatpush1.bf16.msra.mxu0 0
        %1237 = vmatprep.mubr.bf16.mxu0 0
        %1238 = vmatmul.mubr.bf16.gmra.mrb[0].mxu0 %v1166
        %v1239 = vpop.f32.mrb[0].mxu0
        %v1240 = vadd.f32 %v1152, %v1239
        %v1241 = vpop.f32.mrb[0].mxu0
        %v1242 = vpop.f32.mrb[0].mxu0
        %v1243 = vadd.f32 %v1152, %v1242
        %v1244 = vpop.f32.mrb[0].mxu0
        %1245 = vmatprep.mubr.bf16.mxu0 0
        %1246 = vmatmul.mubr.bf16.gmra.mrb[0].mxu0 %v1168
        %v1247 = vpop.f32.mrb[0].mxu0
        %v1248 = vadd.f32 %v1152, %v1247
        %v1249 = vpop.f32.mrb[0].mxu0
        %v1250 = vpop.f32.mrb[0].mxu0
        %v1251 = vadd.f32 %v1152, %v1250
        %v1252 = vpop.f32.mrb[0].mxu0
        %1253 = vmatprep.mubr.bf16.mxu0 0
        %1254 = vmatmul.mubr.bf16.gmra.mrb[0].mxu0 %v1170
        %v1255 = vpop.f32.mrb[0].mxu0
        %v1256 = vadd.f32 %v1152, %v1255
        %v1257 = vpop.f32.mrb[0].mxu0
        %v1258 = vpop.f32.mrb[0].mxu0
        %v1259 = vadd.f32 %v1152, %v1258
        %v1260 = vpop.f32.mrb[0].mxu0
        %1261 = vmatprep.mubr.bf16.mxu0 0
        %1262 = vmatmul.mubr.bf16.gmra.mrb[0].mxu0 %v1172
        %v1263 = vpop.f32.mrb[0].mxu0
        %v1264 = vadd.f32 %v1152, %v1263
        %v1265 = vpop.f32.mrb[0].mxu0
        %v1266 = vpop.f32.mrb[0].mxu0
        %v1267 = vadd.f32 %v1152, %v1266
        %v1268 = vpop.f32.mrb[0].mxu0
        %1269 = vmatprep.mubr.bf16.mxu0 0
        %1270 = vmatmul.mubr.bf16.gmra.mrb[0].mxu0 %v1174
        %v1271 = vpop.f32.mrb[0].mxu0
        %v1272 = vadd.f32 %v1152, %v1271
        %v1273 = vpop.f32.mrb[0].mxu0
        %v1274 = vpop.f32.mrb[0].mxu0
        %v1275 = vadd.f32 %v1152, %v1274
        %v1276 = vpop.f32.mrb[0].mxu0
        %1277 = vmatprep.mubr.bf16.mxu0 0
        %1278 = vmatmul.mubr.bf16.gmra.mrb[0].mxu0 %v1176
        %v1279 = vpop.f32.mrb[0].mxu0
        %v1280 = vadd.f32 %v1152, %v1279
        %v1281 = vpop.f32.mrb[0].mxu0
        %v1282 = vpop.f32.mrb[0].mxu0
        %v1283 = vadd.f32 %v1152, %v1282
        %v1284 = vpop.f32.mrb[0].mxu0
        %1285 = vmatprep.mubr.bf16.mxu0 0
        %1286 = vmatmul.mubr.bf16.gmra.mrb[0].mxu0 %v1178
        %v1287 = vpop.f32.mrb[0].mxu0
        %v1288 = vadd.f32 %v1152, %v1287
        %v1289 = vpop.f32.mrb[0].mxu0
        %v1290 = vpop.f32.mrb[0].mxu0
        %v1291 = vadd.f32 %v1152, %v1290
        %v1292 = vpop.f32.mrb[0].mxu0
        %1293 = vmatprep.mubr.bf16.mxu0 0
        %1294 = vmatmul.mubr.bf16.gmra.mrb[0].mxu0 %v1180
        %v1295 = vpop.f32.mrb[0].mxu0
        %v1296 = vadd.f32 %v1152, %v1295
        %v1297 = vpop.f32.mrb[0].mxu0
        %v1298 = vpop.f32.mrb[0].mxu0
        %v1299 = vadd.f32 %v1152, %v1298
        %v1300 = vpop.f32.mrb[0].mxu0
        %1301 = vmatprep.mubr.bf16.mxu0 0
        %1302 = vmatmul.mubr.bf16.gmra.mrb[0].mxu0 %v1182
        %v1303 = vpop.f32.mrb[0].mxu0
        %v1304 = vadd.f32 %v1152, %v1303
        %v1305 = vpop.f32.mrb[0].mxu0
        %v1306 = vpop.f32.mrb[0].mxu0
        %v1307 = vadd.f32 %v1152, %v1306
        %v1308 = vpop.f32.mrb[0].mxu0
        %1309 = vmatprep.mubr.bf16.mxu0 0
        %1310 = vmatmul.mubr.bf16.gmra.mrb[0].mxu0 %v1184
        %v1311 = vpop.f32.mrb[0].mxu0
        %v1312 = vadd.f32 %v1152, %v1311
        %v1313 = vpop.f32.mrb[0].mxu0
        %v1314 = vpop.f32.mrb[0].mxu0
        %v1315 = vadd.f32 %v1152, %v1314
        %v1316 = vpop.f32.mrb[0].mxu0
        %1317 = vmatprep.mubr.bf16.mxu0 0
        %1318 = vmatmul.mubr.bf16.gmra.mrb[0].mxu0 %v1186
        %v1319 = vpop.f32.mrb[0].mxu0
        %v1320 = vadd.f32 %v1152, %v1319
        %v1321 = vpop.f32.mrb[0].mxu0
        %v1322 = vpop.f32.mrb[0].mxu0
        %v1323 = vadd.f32 %v1152, %v1322
        %v1324 = vpop.f32.mrb[0].mxu0
        %1325 = vmatprep.mubr.bf16.mxu0 0
        %1326 = vmatmul.mubr.bf16.gmra.mrb[0].mxu0 %v1188
        %v1327 = vpop.f32.mrb[0].mxu0
        %v1328 = vadd.f32 %v1152, %v1327
        %v1329 = vpop.f32.mrb[0].mxu0
        %v1330 = vpop.f32.mrb[0].mxu0
        %v1331 = vadd.f32 %v1152, %v1330
        %v1332 = vpop.f32.mrb[0].mxu0
        %1333 = vmatprep.mubr.bf16.mxu0 0
        %1334 = vmatmul.mubr.bf16.gmra.mrb[0].mxu0 %v1190
        %v1335 = vpop.f32.mrb[0].mxu0
        %v1336 = vadd.f32 %v1152, %v1335
        %v1337 = vpop.f32.mrb[0].mxu0
        %v1338 = vpop.f32.mrb[0].mxu0
        %v1339 = vadd.f32 %v1152, %v1338
        %v1340 = vpop.f32.mrb[0].mxu0
        %1341 = vmatprep.mubr.bf16.mxu0 0
        %1342 = vmatmul.mubr.bf16.gmra.mrb[0].mxu0 %v1192
        %v1343 = vpop.f32.mrb[0].mxu0
        %v1344 = vadd.f32 %v1152, %v1343
        %v1345 = vpop.f32.mrb[0].mxu0
        %v1346 = vpop.f32.mrb[0].mxu0
        %v1347 = vadd.f32 %v1152, %v1346
        %v1348 = vpop.f32.mrb[0].mxu0
        %1349 = vmatprep.mubr.bf16.mxu0 0
        %1350 = vmatmul.mubr.bf16.gmra.mrb[0].mxu0 %v1194
        %v1351 = vpop.f32.mrb[0].mxu0
        %v1352 = vadd.f32 %v1152, %v1351
        %v1353 = vpop.f32.mrb[0].mxu0
        %v1354 = vpop.f32.mrb[0].mxu0
        %v1355 = vadd.f32 %v1152, %v1354
        %v1356 = vpop.f32.mrb[0].mxu0
        %1357 = vmatprep.mubr.bf16.mxu0 0
        %1358 = vmatmul.mubr.bf16.gmra.mrb[0].mxu0 %v1196
        %v1359 = vpop.f32.mrb[0].mxu0
        %v1360 = vadd.f32 %v1152, %v1359
        %v1361 = vpop.f32.mrb[0].mxu0
        %v1362 = vpop.f32.mrb[0].mxu0
        %v1363 = vadd.f32 %v1152, %v1362
        %v1364 = vpop.f32.mrb[0].mxu0
        %1365 = vdwg.mxu0
        %v1366 = vmax.f32 %v1240, 0.0
        %v1367 = vmax.f32 %v1243, 0.0
        %v1368 = vmax.f32 %v1248, 0.0
        %v1369 = vmax.f32 %v1251, 0.0
        %v1370 = vmax.f32 %v1256, 0.0
        %v1371 = vmax.f32 %v1259, 0.0
        %v1372 = vmax.f32 %v1264, 0.0
        %v1373 = vmax.f32 %v1267, 0.0
        %v1374 = vmax.f32 %v1272, 0.0
        %v1375 = vmax.f32 %v1275, 0.0
        %v1376 = vmax.f32 %v1280, 0.0
        %v1377 = vmax.f32 %v1283, 0.0
        %v1378 = vmax.f32 %v1288, 0.0
        %v1379 = vmax.f32 %v1291, 0.0
        %v1380 = vmax.f32 %v1296, 0.0
        %v1381 = vmax.f32 %v1299, 0.0
        %v1382 = vmax.f32 %v1304, 0.0
        %v1383 = vmax.f32 %v1307, 0.0
        %v1384 = vmax.f32 %v1312, 0.0
        %v1385 = vmax.f32 %v1315, 0.0
        %v1386 = vmax.f32 %v1320, 0.0
        %v1387 = vmax.f32 %v1323, 0.0
        %v1388 = vmax.f32 %v1328, 0.0
        %v1389 = vmax.f32 %v1331, 0.0
        %v1390 = vmax.f32 %v1336, 0.0
        %v1391 = vmax.f32 %v1339, 0.0
        %v1392 = vmax.f32 %v1344, 0.0
        %v1393 = vmax.f32 %v1347, 0.0
        %v1394 = vmax.f32 %v1352, 0.0
        %v1395 = vmax.f32 %v1355, 0.0
        %v1396 = vmax.f32 %v1360, 0.0
        %v1397 = vmax.f32 %v1363, 0.0
        %v1398 = vmul.f32 %v1366, %v1366
        %v1399 = vmul.f32 %v1367, %v1367
        %v1400 = vmul.f32 %v1368, %v1368
        %v1401 = vmul.f32 %v1369, %v1369
        %v1402 = vmul.f32 %v1370, %v1370
        %v1403 = vmul.f32 %v1371, %v1371
        %v1404 = vmul.f32 %v1372, %v1372
        %v1405 = vmul.f32 %v1373, %v1373
        %v1406 = vmul.f32 %v1374, %v1374
        %v1407 = vmul.f32 %v1375, %v1375
        %v1408 = vmul.f32 %v1376, %v1376
        %v1409 = vmul.f32 %v1377, %v1377
        %v1410 = vmul.f32 %v1378, %v1378
        %v1411 = vmul.f32 %v1379, %v1379
        %v1412 = vmul.f32 %v1380, %v1380
        %v1413 = vmul.f32 %v1381, %v1381
        %v1414 = vmul.f32 %v1382, %v1382
        %v1415 = vmul.f32 %v1383, %v1383
        %v1416 = vmul.f32 %v1384, %v1384
        %v1417 = vmul.f32 %v1385, %v1385
        %v1418 = vmul.f32 %v1386, %v1386
        %v1419 = vmul.f32 %v1387, %v1387
        %v1420 = vmul.f32 %v1388, %v1388
        %v1421 = vmul.f32 %v1389, %v1389
        %v1422 = vmul.f32 %v1390, %v1390
        %v1423 = vmul.f32 %v1391, %v1391
        %v1424 = vmul.f32 %v1392, %v1392
        %v1425 = vmul.f32 %v1393, %v1393
        %v1426 = vmul.f32 %v1394, %v1394
        %v1427 = vmul.f32 %v1395, %v1395
        %v1428 = vmul.f32 %v1396, %v1396
        %v1429 = vmul.f32 %v1397, %v1397
        %vm1430 = vcmask 523264
        %v1431 = vsel %vm1430, %v1398, 0.0
        %1432 = vadd.xlane.f32.xlu0 %v1431
        %v1433 = vpop.xlane.xlu0 %1432
        %v1434 = vsel %vm1430, %v1399, 0.0
        %1435 = vadd.xlane.f32.xlu0 %v1434
        %v1436 = vpop.xlane.xlu0 %1435
        %v1437 = vsel %vm1430, %v1400, 0.0
        %1438 = vadd.xlane.f32.xlu0 %v1437
        %v1439 = vpop.xlane.xlu0 %1438
        %v1440 = vsel %vm1430, %v1401, 0.0
        %1441 = vadd.xlane.f32.xlu0 %v1440
        %v1442 = vpop.xlane.xlu0 %1441
        %v1443 = vsel %vm1430, %v1402, 0.0
        %1444 = vadd.xlane.f32.xlu0 %v1443
        %v1445 = vpop.xlane.xlu0 %1444
        %v1446 = vsel %vm1430, %v1403, 0.0
        %1447 = vadd.xlane.f32.xlu0 %v1446
        %v1448 = vpop.xlane.xlu0 %1447
        %v1449 = vsel %vm1430, %v1404, 0.0
        %1450 = vadd.xlane.f32.xlu0 %v1449
        %v1451 = vpop.xlane.xlu0 %1450
        %v1452 = vsel %vm1430, %v1405, 0.0
        %1453 = vadd.xlane.f32.xlu0 %v1452
        %v1454 = vpop.xlane.xlu0 %1453
        %v1455 = vsel %vm1430, %v1406, 0.0
        %1456 = vadd.xlane.f32.xlu0 %v1455
        %v1457 = vpop.xlane.xlu0 %1456
        %v1458 = vsel %vm1430, %v1407, 0.0
        %1459 = vadd.xlane.f32.xlu0 %v1458
        %v1460 = vpop.xlane.xlu0 %1459
        %v1461 = vsel %vm1430, %v1408, 0.0
        %1462 = vadd.xlane.f32.xlu0 %v1461
        %v1463 = vpop.xlane.xlu0 %1462
        %v1464 = vsel %vm1430, %v1409, 0.0
        %1465 = vadd.xlane.f32.xlu0 %v1464
        %v1466 = vpop.xlane.xlu0 %1465
        %v1467 = vsel %vm1430, %v1410, 0.0
        %1468 = vadd.xlane.f32.xlu0 %v1467
        %v1469 = vpop.xlane.xlu0 %1468
        %v1470 = vsel %vm1430, %v1411, 0.0
        %1471 = vadd.xlane.f32.xlu0 %v1470
        %v1472 = vpop.xlane.xlu0 %1471
        %v1473 = vsel %vm1430, %v1412, 0.0
        %1474 = vadd.xlane.f32.xlu0 %v1473
        %v1475 = vpop.xlane.xlu0 %1474
        %v1476 = vsel %vm1430, %v1413, 0.0
        %1477 = vadd.xlane.f32.xlu0 %v1476
        %v1478 = vpop.xlane.xlu0 %1477
        %v1479 = vsel %vm1430, %v1414, 0.0
        %1480 = vadd.xlane.f32.xlu0 %v1479
        %v1481 = vpop.xlane.xlu0 %1480
        %v1482 = vsel %vm1430, %v1415, 0.0
        %1483 = vadd.xlane.f32.xlu0 %v1482
        %v1484 = vpop.xlane.xlu0 %1483
        %v1485 = vsel %vm1430, %v1416, 0.0
        %1486 = vadd.xlane.f32.xlu0 %v1485
        %v1487 = vpop.xlane.xlu0 %1486
        %v1488 = vsel %vm1430, %v1417, 0.0
        %1489 = vadd.xlane.f32.xlu0 %v1488
        %v1490 = vpop.xlane.xlu0 %1489
        %v1491 = vsel %vm1430, %v1418, 0.0
        %1492 = vadd.xlane.f32.xlu0 %v1491
        %v1493 = vpop.xlane.xlu0 %1492
        %v1494 = vsel %vm1430, %v1419, 0.0
        %1495 = vadd.xlane.f32.xlu0 %v1494
        %v1496 = vpop.xlane.xlu0 %1495
        %v1497 = vsel %vm1430, %v1420, 0.0
        %1498 = vadd.xlane.f32.xlu0 %v1497
        %v1499 = vpop.xlane.xlu0 %1498
        %v1500 = vsel %vm1430, %v1421, 0.0
        %1501 = vadd.xlane.f32.xlu0 %v1500
        %v1502 = vpop.xlane.xlu0 %1501
        %v1503 = vsel %vm1430, %v1422, 0.0
        %1504 = vadd.xlane.f32.xlu0 %v1503
        %v1505 = vpop.xlane.xlu0 %1504
        %v1506 = vsel %vm1430, %v1423, 0.0
        %1507 = vadd.xlane.f32.xlu0 %v1506
        %v1508 = vpop.xlane.xlu0 %1507
        %v1509 = vsel %vm1430, %v1424, 0.0
        %1510 = vadd.xlane.f32.xlu0 %v1509
        %v1511 = vpop.xlane.xlu0 %1510
        %v1512 = vsel %vm1430, %v1425, 0.0
        %1513 = vadd.xlane.f32.xlu0 %v1512
        %v1514 = vpop.xlane.xlu0 %1513
        %v1515 = vsel %vm1430, %v1426, 0.0
        %1516 = vadd.xlane.f32.xlu0 %v1515
        %v1517 = vpop.xlane.xlu0 %1516
        %v1518 = vsel %vm1430, %v1427, 0.0
        %1519 = vadd.xlane.f32.xlu0 %v1518
        %v1520 = vpop.xlane.xlu0 %1519
        %v1521 = vsel %vm1430, %v1428, 0.0
        %1522 = vadd.xlane.f32.xlu0 %v1521
        %v1523 = vpop.xlane.xlu0 %1522
        %v1524 = vsel %vm1430, %v1429, 0.0
        %1525 = vadd.xlane.f32.xlu0 %v1524
        %v1526 = vpop.xlane.xlu0 %1525
        %v1527 = vmax.f32 %v1433, 1e-24
        %v1528 = vmax.f32 %v1436, 1e-24
        %v1529 = vmax.f32 %v1439, 1e-24
        %v1530 = vmax.f32 %v1442, 1e-24
        %v1531 = vmax.f32 %v1445, 1e-24
        %v1532 = vmax.f32 %v1448, 1e-24
        %v1533 = vmax.f32 %v1451, 1e-24
        %v1534 = vmax.f32 %v1454, 1e-24
        %v1535 = vmax.f32 %v1457, 1e-24
        %v1536 = vmax.f32 %v1460, 1e-24
        %v1537 = vmax.f32 %v1463, 1e-24
        %v1538 = vmax.f32 %v1466, 1e-24
        %v1539 = vmax.f32 %v1469, 1e-24
        %v1540 = vmax.f32 %v1472, 1e-24
        %v1541 = vmax.f32 %v1475, 1e-24
        %v1542 = vmax.f32 %v1478, 1e-24
        %v1543 = vmax.f32 %v1481, 1e-24
        %v1544 = vmax.f32 %v1484, 1e-24
        %v1545 = vmax.f32 %v1487, 1e-24
        %v1546 = vmax.f32 %v1490, 1e-24
        %v1547 = vmax.f32 %v1493, 1e-24
        %v1548 = vmax.f32 %v1496, 1e-24
        %v1549 = vmax.f32 %v1499, 1e-24
        %v1550 = vmax.f32 %v1502, 1e-24
        %v1551 = vmax.f32 %v1505, 1e-24
        %v1552 = vmax.f32 %v1508, 1e-24
        %v1553 = vmax.f32 %v1511, 1e-24
        %v1554 = vmax.f32 %v1514, 1e-24
        %v1555 = vmax.f32 %v1517, 1e-24
        %v1556 = vmax.f32 %v1520, 1e-24
        %v1557 = vmax.f32 %v1523, 1e-24
        %v1558 = vmax.f32 %v1526, 1e-24
        %v1559 = vrsqrt.pop %v1527
        %v1560 = vrsqrt.pop %v1528
        %v1561 = vrsqrt.pop %v1529
        %v1562 = vrsqrt.pop %v1530
        %v1563 = vrsqrt.pop %v1531
        %v1564 = vrsqrt.pop %v1532
        %v1565 = vrsqrt.pop %v1533
        %v1566 = vrsqrt.pop %v1534
        %v1567 = vrsqrt.pop %v1535
        %v1568 = vrsqrt.pop %v1536
        %v1569 = vrsqrt.pop %v1537
        %v1570 = vrsqrt.pop %v1538
        %v1571 = vrsqrt.pop %v1539
        %v1572 = vrsqrt.pop %v1540
        %v1573 = vrsqrt.pop %v1541
        %v1574 = vrsqrt.pop %v1542
        %v1575 = vrsqrt.pop %v1543
        %v1576 = vrsqrt.pop %v1544
        %v1577 = vrsqrt.pop %v1545
        %v1578 = vrsqrt.pop %v1546
        %v1579 = vrsqrt.pop %v1547
        %v1580 = vrsqrt.pop %v1548
        %v1581 = vrsqrt.pop %v1549
        %v1582 = vrsqrt.pop %v1550
        %v1583 = vrsqrt.pop %v1551
        %v1584 = vrsqrt.pop %v1552
        %v1585 = vrsqrt.pop %v1553
        %v1586 = vrsqrt.pop %v1554
        %v1587 = vrsqrt.pop %v1555
        %v1588 = vrsqrt.pop %v1556
        %v1589 = vrsqrt.pop %v1557
        %v1590 = vrsqrt.pop %v1558
        %v1591 = vmul.f32 %v1366, %v1559
        %v1592 = vmul.f32 %v1367, %v1560
        %v1593 = vmul.f32 %v1368, %v1561
        %v1594 = vmul.f32 %v1369, %v1562
        %v1595 = vmul.f32 %v1370, %v1563
        %v1596 = vmul.f32 %v1371, %v1564
        %v1597 = vmul.f32 %v1372, %v1565
        %v1598 = vmul.f32 %v1373, %v1566
        %v1599 = vmul.f32 %v1374, %v1567
        %v1600 = vmul.f32 %v1375, %v1568
        %v1601 = vmul.f32 %v1376, %v1569
        %v1602 = vmul.f32 %v1377, %v1570
        %v1603 = vmul.f32 %v1378, %v1571
        %v1604 = vmul.f32 %v1379, %v1572
        %v1605 = vmul.f32 %v1380, %v1573
        %v1606 = vmul.f32 %v1381, %v1574
        %v1607 = vmul.f32 %v1382, %v1575
        %v1608 = vmul.f32 %v1383, %v1576
        %v1609 = vmul.f32 %v1384, %v1577
        %v1610 = vmul.f32 %v1385, %v1578
        %v1611 = vmul.f32 %v1386, %v1579
        %v1612 = vmul.f32 %v1387, %v1580
        %v1613 = vmul.f32 %v1388, %v1581
        %v1614 = vmul.f32 %v1389, %v1582
        %v1615 = vmul.f32 %v1390, %v1583
        %v1616 = vmul.f32 %v1391, %v1584
        %v1617 = vmul.f32 %v1392, %v1585
        %v1618 = vmul.f32 %v1393, %v1586
        %v1619 = vmul.f32 %v1394, %v1587
        %v1620 = vmul.f32 %v1395, %v1588
        %v1621 = vmul.f32 %v1396, %v1589
        %v1622 = vmul.f32 %v1397, %v1590
        %v1623 = vpack.c.bf16 %v1592, %v1591
        %v1624 = vpack.c.bf16 %v1594, %v1593
        %v1625 = vpack.c.bf16 %v1596, %v1595
        %v1626 = vpack.c.bf16 %v1598, %v1597
        %v1627 = vpack.c.bf16 %v1600, %v1599
        %v1628 = vpack.c.bf16 %v1602, %v1601
        %v1629 = vpack.c.bf16 %v1604, %v1603
        %v1630 = vpack.c.bf16 %v1606, %v1605
        %v1631 = vpack.c.bf16 %v1608, %v1607
        %v1632 = vpack.c.bf16 %v1610, %v1609
        %v1633 = vpack.c.bf16 %v1612, %v1611
        %v1634 = vpack.c.bf16 %v1614, %v1613
        %v1635 = vpack.c.bf16 %v1616, %v1615
        %v1636 = vpack.c.bf16 %v1618, %v1617
        %v1637 = vpack.c.bf16 %v1620, %v1619
        %v1638 = vpack.c.bf16 %v1622, %v1621
        %v1639 = vld [vmem:[%s3] sm:$0xf]
        %v1640 = vld [vmem:[%s3 + $0x4] sm:$0xf]
        %v1641 = vld [vmem:[%s3 + $0x8] sm:$0xf]
        %v1642 = vld [vmem:[%s3 + $0xc] sm:$0xf]
        %v1643 = vld [vmem:[%s3 + $0x10] sm:$0xf]
        %v1644 = vld [vmem:[%s3 + $0x14] sm:$0xf]
        %v1645 = vld [vmem:[%s3 + $0x18] sm:$0xf]
        %v1646 = vld [vmem:[%s3 + $0x1c] sm:$0xf]
        %v1655 = vunpack.c.l.b16 %v1639
        %v1656 = vunpack.c.l.b16 %v1640
        %v1657 = vunpack.c.l.b16 %v1641
        %v1658 = vunpack.c.l.b16 %v1642
        %v1659 = vunpack.c.l.b16 %v1643
        %v1660 = vunpack.c.l.b16 %v1644
        %v1661 = vunpack.c.l.b16 %v1645
        %v1662 = vunpack.c.l.b16 %v1646
        %v1663 = vpack.c.b16 %v1656, %v1655
        %v1664 = vpack.c.b16 %v1658, %v1657
        %v1665 = vpack.c.b16 %v1660, %v1659
        %v1666 = vpack.c.b16 %v1662, %v1661
        %v1672 = vsel %vm1430, %v1623, 0
        %v1675 = vsel %vm1430, %v1624, 0
        %v1678 = vsel %vm1430, %v1625, 0
        %v1681 = vsel %vm1430, %v1626, 0
        %v1684 = vsel %vm1430, %v1627, 0
        %v1687 = vsel %vm1430, %v1628, 0
        %v1690 = vsel %vm1430, %v1629, 0
        %v1693 = vsel %vm1430, %v1630, 0
        %v1696 = vsel %vm1430, %v1631, 0
        %v1699 = vsel %vm1430, %v1632, 0
        %v1702 = vsel %vm1430, %v1633, 0
        %v1705 = vsel %vm1430, %v1634, 0
        %v1708 = vsel %vm1430, %v1635, 0
        %v1711 = vsel %vm1430, %v1636, 0
        %v1714 = vsel %vm1430, %v1637, 0
        %v1717 = vsel %vm1430, %v1638, 0
        %1719 = vmatprep.subr.bf16.mxu0 0
        %1720 = vmatpush1.bf16.msra.mxu0 %v1663
        %1721 = vmatprep.subr.bf16.mxu0 0
        %1722 = vmatpush1.bf16.msra.mxu0 %v1664
        %1723 = vmatprep.subr.bf16.mxu0 0
        %1724 = vmatpush1.bf16.msra.mxu0 %v1665
        %1725 = vmatprep.subr.bf16.mxu0 0
        %1726 = vmatpush1.bf16.msra.mxu0 %v1666
        %1727 = vmatprep.subr.bf16.mxu0 0
        %1728 = vmatpush1.bf16.msra.mxu0 0
        %1729 = vmatprep.subr.bf16.mxu0 0
        %1730 = vmatpush1.bf16.msra.mxu0 0
        %1731 = vmatprep.subr.bf16.mxu0 0
        %1732 = vmatpush1.bf16.msra.mxu0 0
        %1733 = vmatprep.subr.bf16.mxu0 0
        %1734 = vmatpush1.bf16.msra.mxu0 0
        %1735 = vmatprep.subr.bf16.mxu0 0
        %1736 = vmatpush1.bf16.msra.mxu0 0
        %1737 = vmatprep.subr.bf16.mxu0 0
        %1738 = vmatpush1.bf16.msra.mxu0 0
        %1739 = vmatprep.subr.bf16.mxu0 0
        %1740 = vmatpush1.bf16.msra.mxu0 0
        %1741 = vmatprep.subr.bf16.mxu0 0
        %1742 = vmatpush1.bf16.msra.mxu0 0
        %1743 = vmatprep.subr.bf16.mxu0 0
        %1744 = vmatpush1.bf16.msra.mxu0 0
        %1745 = vmatprep.subr.bf16.mxu0 0
        %1746 = vmatpush1.bf16.msra.mxu0 0
        %1747 = vmatprep.subr.bf16.mxu0 0
        %1748 = vmatpush1.bf16.msra.mxu0 0
        %1749 = vmatprep.subr.bf16.mxu0 0
        %1750 = vmatpush1.bf16.msra.mxu0 0
        %1751 = vmatprep.mubr.bf16.mxu0 0
        %1752 = vmatmul.mubr.bf16.gmra.mrb[0].mxu0 %v1672
        %v1753 = vpop.f32.mrb[0].mxu0
        %v1754 = vadd.f32 0.0, %v1753
        %v1755 = vpop.f32.mrb[0].mxu0
        %v1756 = vpop.f32.mrb[0].mxu0
        %v1757 = vadd.f32 0.0, %v1756
        %v1758 = vpop.f32.mrb[0].mxu0
        %1759 = vmatprep.mubr.bf16.mxu0 0
        %1760 = vmatmul.mubr.bf16.gmra.mrb[0].mxu0 %v1675
        %v1761 = vpop.f32.mrb[0].mxu0
        %v1762 = vadd.f32 0.0, %v1761
        %v1763 = vpop.f32.mrb[0].mxu0
        %v1764 = vpop.f32.mrb[0].mxu0
        %v1765 = vadd.f32 0.0, %v1764
        %v1766 = vpop.f32.mrb[0].mxu0
        %1767 = vmatprep.mubr.bf16.mxu0 0
        %1768 = vmatmul.mubr.bf16.gmra.mrb[0].mxu0 %v1678
        %v1769 = vpop.f32.mrb[0].mxu0
        %v1770 = vadd.f32 0.0, %v1769
        %v1771 = vpop.f32.mrb[0].mxu0
        %v1772 = vpop.f32.mrb[0].mxu0
        %v1773 = vadd.f32 0.0, %v1772
        %v1774 = vpop.f32.mrb[0].mxu0
        %1775 = vmatprep.mubr.bf16.mxu0 0
        %1776 = vmatmul.mubr.bf16.gmra.mrb[0].mxu0 %v1681
        %v1777 = vpop.f32.mrb[0].mxu0
        %v1778 = vadd.f32 0.0, %v1777
        %v1779 = vpop.f32.mrb[0].mxu0
        %v1780 = vpop.f32.mrb[0].mxu0
        %v1781 = vadd.f32 0.0, %v1780
        %v1782 = vpop.f32.mrb[0].mxu0
        %1783 = vmatprep.mubr.bf16.mxu0 0
        %1784 = vmatmul.mubr.bf16.gmra.mrb[0].mxu0 %v1684
        %v1785 = vpop.f32.mrb[0].mxu0
        %v1786 = vadd.f32 0.0, %v1785
        %v1787 = vpop.f32.mrb[0].mxu0
        %v1788 = vpop.f32.mrb[0].mxu0
        %v1789 = vadd.f32 0.0, %v1788
        %v1790 = vpop.f32.mrb[0].mxu0
        %1791 = vmatprep.mubr.bf16.mxu0 0
        %1792 = vmatmul.mubr.bf16.gmra.mrb[0].mxu0 %v1687
        %v1793 = vpop.f32.mrb[0].mxu0
        %v1794 = vadd.f32 0.0, %v1793
        %v1795 = vpop.f32.mrb[0].mxu0
        %v1796 = vpop.f32.mrb[0].mxu0
        %v1797 = vadd.f32 0.0, %v1796
        %v1798 = vpop.f32.mrb[0].mxu0
        %1799 = vmatprep.mubr.bf16.mxu0 0
        %1800 = vmatmul.mubr.bf16.gmra.mrb[0].mxu0 %v1690
        %v1801 = vpop.f32.mrb[0].mxu0
        %v1802 = vadd.f32 0.0, %v1801
        %v1803 = vpop.f32.mrb[0].mxu0
        %v1804 = vpop.f32.mrb[0].mxu0
        %v1805 = vadd.f32 0.0, %v1804
        %v1806 = vpop.f32.mrb[0].mxu0
        %1807 = vmatprep.mubr.bf16.mxu0 0
        %1808 = vmatmul.mubr.bf16.gmra.mrb[0].mxu0 %v1693
        %v1809 = vpop.f32.mrb[0].mxu0
        %v1810 = vadd.f32 0.0, %v1809
        %v1811 = vpop.f32.mrb[0].mxu0
        %v1812 = vpop.f32.mrb[0].mxu0
        %v1813 = vadd.f32 0.0, %v1812
        %v1814 = vpop.f32.mrb[0].mxu0
        %1815 = vmatprep.mubr.bf16.mxu0 0
        %1816 = vmatmul.mubr.bf16.gmra.mrb[0].mxu0 %v1696
        %v1817 = vpop.f32.mrb[0].mxu0
        %v1818 = vadd.f32 0.0, %v1817
        %v1819 = vpop.f32.mrb[0].mxu0
        %v1820 = vpop.f32.mrb[0].mxu0
        %v1821 = vadd.f32 0.0, %v1820
        %v1822 = vpop.f32.mrb[0].mxu0
        %1823 = vmatprep.mubr.bf16.mxu0 0
        %1824 = vmatmul.mubr.bf16.gmra.mrb[0].mxu0 %v1699
        %v1825 = vpop.f32.mrb[0].mxu0
        %v1826 = vadd.f32 0.0, %v1825
        %v1827 = vpop.f32.mrb[0].mxu0
        %v1828 = vpop.f32.mrb[0].mxu0
        %v1829 = vadd.f32 0.0, %v1828
        %v1830 = vpop.f32.mrb[0].mxu0
        %1831 = vmatprep.mubr.bf16.mxu0 0
        %1832 = vmatmul.mubr.bf16.gmra.mrb[0].mxu0 %v1702
        %v1833 = vpop.f32.mrb[0].mxu0
        %v1834 = vadd.f32 0.0, %v1833
        %v1835 = vpop.f32.mrb[0].mxu0
        %v1836 = vpop.f32.mrb[0].mxu0
        %v1837 = vadd.f32 0.0, %v1836
        %v1838 = vpop.f32.mrb[0].mxu0
        %1839 = vmatprep.mubr.bf16.mxu0 0
        %1840 = vmatmul.mubr.bf16.gmra.mrb[0].mxu0 %v1705
        %v1841 = vpop.f32.mrb[0].mxu0
        %v1842 = vadd.f32 0.0, %v1841
        %v1843 = vpop.f32.mrb[0].mxu0
        %v1844 = vpop.f32.mrb[0].mxu0
        %v1845 = vadd.f32 0.0, %v1844
        %v1846 = vpop.f32.mrb[0].mxu0
        %1847 = vmatprep.mubr.bf16.mxu0 0
        %1848 = vmatmul.mubr.bf16.gmra.mrb[0].mxu0 %v1708
        %v1849 = vpop.f32.mrb[0].mxu0
        %v1850 = vadd.f32 0.0, %v1849
        %v1851 = vpop.f32.mrb[0].mxu0
        %v1852 = vpop.f32.mrb[0].mxu0
        %v1853 = vadd.f32 0.0, %v1852
        %v1854 = vpop.f32.mrb[0].mxu0
        %1855 = vmatprep.mubr.bf16.mxu0 0
        %1856 = vmatmul.mubr.bf16.gmra.mrb[0].mxu0 %v1711
        %v1857 = vpop.f32.mrb[0].mxu0
        %v1858 = vadd.f32 0.0, %v1857
        %v1859 = vpop.f32.mrb[0].mxu0
        %v1860 = vpop.f32.mrb[0].mxu0
        %v1861 = vadd.f32 0.0, %v1860
        %v1862 = vpop.f32.mrb[0].mxu0
        %1863 = vmatprep.mubr.bf16.mxu0 0
        %1864 = vmatmul.mubr.bf16.gmra.mrb[0].mxu0 %v1714
        %v1865 = vpop.f32.mrb[0].mxu0
        %v1866 = vadd.f32 0.0, %v1865
        %v1867 = vpop.f32.mrb[0].mxu0
        %v1868 = vpop.f32.mrb[0].mxu0
        %v1869 = vadd.f32 0.0, %v1868
        %v1870 = vpop.f32.mrb[0].mxu0
        %1871 = vmatprep.mubr.bf16.mxu0 0
        %1872 = vmatmul.mubr.bf16.gmra.mrb[0].mxu0 %v1717
        %v1873 = vpop.f32.mrb[0].mxu0
        %v1874 = vadd.f32 0.0, %v1873
        %v1875 = vpop.f32.mrb[0].mxu0
        %v1876 = vpop.f32.mrb[0].mxu0
        %v1877 = vadd.f32 0.0, %v1876
        %v1878 = vpop.f32.mrb[0].mxu0
        %1879 = vdwg.mxu0
        %1880 = vmax.xlane.f32.xlu0 %v1754
        %v1881 = vpop.xlane.xlu0 %1880
        %1882 = vmax.xlane.f32.xlu0 %v1757
        %v1883 = vpop.xlane.xlu0 %1882
        %1884 = vmax.xlane.f32.xlu0 %v1762
        %v1885 = vpop.xlane.xlu0 %1884
        %1886 = vmax.xlane.f32.xlu0 %v1765
        %v1887 = vpop.xlane.xlu0 %1886
        %1888 = vmax.xlane.f32.xlu0 %v1770
        %v1889 = vpop.xlane.xlu0 %1888
        %1890 = vmax.xlane.f32.xlu0 %v1773
        %v1891 = vpop.xlane.xlu0 %1890
        %1892 = vmax.xlane.f32.xlu0 %v1778
        %v1893 = vpop.xlane.xlu0 %1892
        %1894 = vmax.xlane.f32.xlu0 %v1781
        %v1895 = vpop.xlane.xlu0 %1894
        %1896 = vmax.xlane.f32.xlu0 %v1786
        %v1897 = vpop.xlane.xlu0 %1896
        %1898 = vmax.xlane.f32.xlu0 %v1789
        %v1899 = vpop.xlane.xlu0 %1898
        %1900 = vmax.xlane.f32.xlu0 %v1794
        %v1901 = vpop.xlane.xlu0 %1900
        %1902 = vmax.xlane.f32.xlu0 %v1797
        %v1903 = vpop.xlane.xlu0 %1902
        %1904 = vmax.xlane.f32.xlu0 %v1802
        %v1905 = vpop.xlane.xlu0 %1904
        %1906 = vmax.xlane.f32.xlu0 %v1805
        %v1907 = vpop.xlane.xlu0 %1906
        %1908 = vmax.xlane.f32.xlu0 %v1810
        %v1909 = vpop.xlane.xlu0 %1908
        %1910 = vmax.xlane.f32.xlu0 %v1813
        %v1911 = vpop.xlane.xlu0 %1910
        %1912 = vmax.xlane.f32.xlu0 %v1818
        %v1913 = vpop.xlane.xlu0 %1912
        %1914 = vmax.xlane.f32.xlu0 %v1821
        %v1915 = vpop.xlane.xlu0 %1914
        %1916 = vmax.xlane.f32.xlu0 %v1826
        %v1917 = vpop.xlane.xlu0 %1916
        %1918 = vmax.xlane.f32.xlu0 %v1829
        %v1919 = vpop.xlane.xlu0 %1918
        %1920 = vmax.xlane.f32.xlu0 %v1834
        %v1921 = vpop.xlane.xlu0 %1920
        %1922 = vmax.xlane.f32.xlu0 %v1837
        %v1923 = vpop.xlane.xlu0 %1922
        %1924 = vmax.xlane.f32.xlu0 %v1842
        %v1925 = vpop.xlane.xlu0 %1924
        %1926 = vmax.xlane.f32.xlu0 %v1845
        %v1927 = vpop.xlane.xlu0 %1926
        %1928 = vmax.xlane.f32.xlu0 %v1850
        %v1929 = vpop.xlane.xlu0 %1928
        %1930 = vmax.xlane.f32.xlu0 %v1853
        %v1931 = vpop.xlane.xlu0 %1930
        %1932 = vmax.xlane.f32.xlu0 %v1858
        %v1933 = vpop.xlane.xlu0 %1932
        %1934 = vmax.xlane.f32.xlu0 %v1861
        %v1935 = vpop.xlane.xlu0 %1934
        %1936 = vmax.xlane.f32.xlu0 %v1866
        %v1937 = vpop.xlane.xlu0 %1936
        %1938 = vmax.xlane.f32.xlu0 %v1869
        %v1939 = vpop.xlane.xlu0 %1938
        %1940 = vmax.xlane.f32.xlu0 %v1874
        %v1941 = vpop.xlane.xlu0 %1940
        %1942 = vmax.xlane.f32.xlu0 %v1877
        %v1943 = vpop.xlane.xlu0 %1942
        %v1944 = vsub.f32 %v1754, %v1881
        %v1945 = vsub.f32 %v1757, %v1883
        %v1946 = vsub.f32 %v1762, %v1885
        %v1947 = vsub.f32 %v1765, %v1887
        %v1948 = vsub.f32 %v1770, %v1889
        %v1949 = vsub.f32 %v1773, %v1891
        %v1950 = vsub.f32 %v1778, %v1893
        %v1951 = vsub.f32 %v1781, %v1895
        %v1952 = vsub.f32 %v1786, %v1897
        %v1953 = vsub.f32 %v1789, %v1899
        %v1954 = vsub.f32 %v1794, %v1901
        %v1955 = vsub.f32 %v1797, %v1903
        %v1956 = vsub.f32 %v1802, %v1905
        %v1957 = vsub.f32 %v1805, %v1907
        %v1958 = vsub.f32 %v1810, %v1909
        %v1959 = vsub.f32 %v1813, %v1911
        %v1960 = vsub.f32 %v1818, %v1913
        %v1961 = vsub.f32 %v1821, %v1915
        %v1962 = vsub.f32 %v1826, %v1917
        %v1963 = vsub.f32 %v1829, %v1919
        %v1964 = vsub.f32 %v1834, %v1921
        %v1965 = vsub.f32 %v1837, %v1923
        %v1966 = vsub.f32 %v1842, %v1925
        %v1967 = vsub.f32 %v1845, %v1927
        %v1968 = vsub.f32 %v1850, %v1929
        %v1969 = vsub.f32 %v1853, %v1931
        %v1970 = vsub.f32 %v1858, %v1933
        %v1971 = vsub.f32 %v1861, %v1935
        %v1972 = vsub.f32 %v1866, %v1937
        %v1973 = vsub.f32 %v1869, %v1939
        %v1974 = vsub.f32 %v1874, %v1941
        %v1975 = vsub.f32 %v1877, %v1943
        %v1976 = vlaneseq
        %v1977 = vand.u32 %v1976, 127
        %vm1978 = vcmp.lt.s32.totalorder %v1977, 8
        %v1979 = vmul.f32 %v1944, 1.442695
        %v1980 = vpow.pop %v1979
        %v1981 = vmul.f32 %v1945, 1.442695
        %v1982 = vpow.pop %v1981
        %v1983 = vmul.f32 %v1946, 1.442695
        %v1984 = vpow.pop %v1983
        %v1985 = vmul.f32 %v1947, 1.442695
        %v1986 = vpow.pop %v1985
        %v1987 = vmul.f32 %v1948, 1.442695
        %v1988 = vpow.pop %v1987
        %v1989 = vmul.f32 %v1949, 1.442695
        %v1990 = vpow.pop %v1989
        %v1991 = vmul.f32 %v1950, 1.442695
        %v1992 = vpow.pop %v1991
        %v1993 = vmul.f32 %v1951, 1.442695
        %v1994 = vpow.pop %v1993
        %v1995 = vmul.f32 %v1952, 1.442695
        %v1996 = vpow.pop %v1995
        %v1997 = vmul.f32 %v1953, 1.442695
        %v1998 = vpow.pop %v1997
        %v1999 = vmul.f32 %v1954, 1.442695
        %v2000 = vpow.pop %v1999
        %v2001 = vmul.f32 %v1955, 1.442695
        %v2002 = vpow.pop %v2001
        %v2003 = vmul.f32 %v1956, 1.442695
        %v2004 = vpow.pop %v2003
        %v2005 = vmul.f32 %v1957, 1.442695
        %v2006 = vpow.pop %v2005
        %v2007 = vmul.f32 %v1958, 1.442695
        %v2008 = vpow.pop %v2007
        %v2009 = vmul.f32 %v1959, 1.442695
        %v2010 = vpow.pop %v2009
        %v2011 = vmul.f32 %v1960, 1.442695
        %v2012 = vpow.pop %v2011
        %v2013 = vmul.f32 %v1961, 1.442695
        %v2014 = vpow.pop %v2013
        %v2015 = vmul.f32 %v1962, 1.442695
        %v2016 = vpow.pop %v2015
        %v2017 = vmul.f32 %v1963, 1.442695
        %v2018 = vpow.pop %v2017
        %v2019 = vmul.f32 %v1964, 1.442695
        %v2020 = vpow.pop %v2019
        %v2021 = vmul.f32 %v1965, 1.442695
        %v2022 = vpow.pop %v2021
        %v2023 = vmul.f32 %v1966, 1.442695
        %v2024 = vpow.pop %v2023
        %v2025 = vmul.f32 %v1967, 1.442695
        %v2026 = vpow.pop %v2025
        %v2027 = vmul.f32 %v1968, 1.442695
        %v2028 = vpow.pop %v2027
        %v2029 = vmul.f32 %v1969, 1.442695
        %v2030 = vpow.pop %v2029
        %v2031 = vmul.f32 %v1970, 1.442695
        %v2032 = vpow.pop %v2031
        %v2033 = vmul.f32 %v1971, 1.442695
        %v2034 = vpow.pop %v2033
        %v2035 = vmul.f32 %v1972, 1.442695
        %v2036 = vpow.pop %v2035
        %v2037 = vmul.f32 %v1973, 1.442695
        %v2038 = vpow.pop %v2037
        %v2039 = vmul.f32 %v1974, 1.442695
        %v2040 = vpow.pop %v2039
        %v2041 = vmul.f32 %v1975, 1.442695
        %v2042 = vpow.pop %v2041
        %v2043 = vsel %vm1978, %v1980, 0.0
        %v2044 = vsel %vm1978, %v1982, 0.0
        %v2045 = vsel %vm1978, %v1984, 0.0
        %v2046 = vsel %vm1978, %v1986, 0.0
        %v2047 = vsel %vm1978, %v1988, 0.0
        %v2048 = vsel %vm1978, %v1990, 0.0
        %v2049 = vsel %vm1978, %v1992, 0.0
        %v2050 = vsel %vm1978, %v1994, 0.0
        %v2051 = vsel %vm1978, %v1996, 0.0
        %v2052 = vsel %vm1978, %v1998, 0.0
        %v2053 = vsel %vm1978, %v2000, 0.0
        %v2054 = vsel %vm1978, %v2002, 0.0
        %v2055 = vsel %vm1978, %v2004, 0.0
        %v2056 = vsel %vm1978, %v2006, 0.0
        %v2057 = vsel %vm1978, %v2008, 0.0
        %v2058 = vsel %vm1978, %v2010, 0.0
        %v2059 = vsel %vm1978, %v2012, 0.0
        %v2060 = vsel %vm1978, %v2014, 0.0
        %v2061 = vsel %vm1978, %v2016, 0.0
        %v2062 = vsel %vm1978, %v2018, 0.0
        %v2063 = vsel %vm1978, %v2020, 0.0
        %v2064 = vsel %vm1978, %v2022, 0.0
        %v2065 = vsel %vm1978, %v2024, 0.0
        %v2066 = vsel %vm1978, %v2026, 0.0
        %v2067 = vsel %vm1978, %v2028, 0.0
        %v2068 = vsel %vm1978, %v2030, 0.0
        %v2069 = vsel %vm1978, %v2032, 0.0
        %v2070 = vsel %vm1978, %v2034, 0.0
        %v2071 = vsel %vm1978, %v2036, 0.0
        %v2072 = vsel %vm1978, %v2038, 0.0
        %v2073 = vsel %vm1978, %v2040, 0.0
        %v2074 = vsel %vm1978, %v2042, 0.0
        %2075 = vadd.xlane.f32.xlu0 %v2043
        %v2076 = vpop.xlane.xlu0 %2075
        %2077 = vadd.xlane.f32.xlu0 %v2044
        %v2078 = vpop.xlane.xlu0 %2077
        %2079 = vadd.xlane.f32.xlu0 %v2045
        %v2080 = vpop.xlane.xlu0 %2079
        %2081 = vadd.xlane.f32.xlu0 %v2046
        %v2082 = vpop.xlane.xlu0 %2081
        %2083 = vadd.xlane.f32.xlu0 %v2047
        %v2084 = vpop.xlane.xlu0 %2083
        %2085 = vadd.xlane.f32.xlu0 %v2048
        %v2086 = vpop.xlane.xlu0 %2085
        %2087 = vadd.xlane.f32.xlu0 %v2049
        %v2088 = vpop.xlane.xlu0 %2087
        %2089 = vadd.xlane.f32.xlu0 %v2050
        %v2090 = vpop.xlane.xlu0 %2089
        %2091 = vadd.xlane.f32.xlu0 %v2051
        %v2092 = vpop.xlane.xlu0 %2091
        %2093 = vadd.xlane.f32.xlu0 %v2052
        %v2094 = vpop.xlane.xlu0 %2093
        %2095 = vadd.xlane.f32.xlu0 %v2053
        %v2096 = vpop.xlane.xlu0 %2095
        %2097 = vadd.xlane.f32.xlu0 %v2054
        %v2098 = vpop.xlane.xlu0 %2097
        %2099 = vadd.xlane.f32.xlu0 %v2055
        %v2100 = vpop.xlane.xlu0 %2099
        %2101 = vadd.xlane.f32.xlu0 %v2056
        %v2102 = vpop.xlane.xlu0 %2101
        %2103 = vadd.xlane.f32.xlu0 %v2057
        %v2104 = vpop.xlane.xlu0 %2103
        %2105 = vadd.xlane.f32.xlu0 %v2058
        %v2106 = vpop.xlane.xlu0 %2105
        %2107 = vadd.xlane.f32.xlu0 %v2059
        %v2108 = vpop.xlane.xlu0 %2107
        %2109 = vadd.xlane.f32.xlu0 %v2060
        %v2110 = vpop.xlane.xlu0 %2109
        %2111 = vadd.xlane.f32.xlu0 %v2061
        %v2112 = vpop.xlane.xlu0 %2111
        %2113 = vadd.xlane.f32.xlu0 %v2062
        %v2114 = vpop.xlane.xlu0 %2113
        %2115 = vadd.xlane.f32.xlu0 %v2063
        %v2116 = vpop.xlane.xlu0 %2115
        %2117 = vadd.xlane.f32.xlu0 %v2064
        %v2118 = vpop.xlane.xlu0 %2117
        %2119 = vadd.xlane.f32.xlu0 %v2065
        %v2120 = vpop.xlane.xlu0 %2119
        %2121 = vadd.xlane.f32.xlu0 %v2066
        %v2122 = vpop.xlane.xlu0 %2121
        %2123 = vadd.xlane.f32.xlu0 %v2067
        %v2124 = vpop.xlane.xlu0 %2123
        %2125 = vadd.xlane.f32.xlu0 %v2068
        %v2126 = vpop.xlane.xlu0 %2125
        %2127 = vadd.xlane.f32.xlu0 %v2069
        %v2128 = vpop.xlane.xlu0 %2127
        %2129 = vadd.xlane.f32.xlu0 %v2070
        %v2130 = vpop.xlane.xlu0 %2129
        %2131 = vadd.xlane.f32.xlu0 %v2071
        %v2132 = vpop.xlane.xlu0 %2131
        %2133 = vadd.xlane.f32.xlu0 %v2072
        %v2134 = vpop.xlane.xlu0 %2133
        %2135 = vadd.xlane.f32.xlu0 %v2073
        %v2136 = vpop.xlane.xlu0 %2135
        %2137 = vadd.xlane.f32.xlu0 %v2074
        %v2138 = vpop.xlane.xlu0 %2137
        %v2139 = vrcp.pop %v2076
        %v2140 = vrcp.pop %v2078
        %v2141 = vrcp.pop %v2080
        %v2142 = vrcp.pop %v2082
        %v2143 = vrcp.pop %v2084
        %v2144 = vrcp.pop %v2086
        %v2145 = vrcp.pop %v2088
        %v2146 = vrcp.pop %v2090
        %v2147 = vrcp.pop %v2092
        %v2148 = vrcp.pop %v2094
        %v2149 = vrcp.pop %v2096
        %v2150 = vrcp.pop %v2098
        %v2151 = vrcp.pop %v2100
        %v2152 = vrcp.pop %v2102
        %v2153 = vrcp.pop %v2104
        %v2154 = vrcp.pop %v2106
        %v2155 = vrcp.pop %v2108
        %v2156 = vrcp.pop %v2110
        %v2157 = vrcp.pop %v2112
        %v2158 = vrcp.pop %v2114
        %v2159 = vrcp.pop %v2116
        %v2160 = vrcp.pop %v2118
        %v2161 = vrcp.pop %v2120
        %v2162 = vrcp.pop %v2122
        %v2163 = vrcp.pop %v2124
        %v2164 = vrcp.pop %v2126
        %v2165 = vrcp.pop %v2128
        %v2166 = vrcp.pop %v2130
        %v2167 = vrcp.pop %v2132
        %v2168 = vrcp.pop %v2134
        %v2169 = vrcp.pop %v2136
        %v2170 = vrcp.pop %v2138
        %v2171 = vmul.f32 %v2043, %v2139
        %v2172 = vmul.f32 %v2044, %v2140
        %v2173 = vmul.f32 %v2045, %v2141
        %v2174 = vmul.f32 %v2046, %v2142
        %v2175 = vmul.f32 %v2047, %v2143
        %v2176 = vmul.f32 %v2048, %v2144
        %v2177 = vmul.f32 %v2049, %v2145
        %v2178 = vmul.f32 %v2050, %v2146
        %v2179 = vmul.f32 %v2051, %v2147
        %v2180 = vmul.f32 %v2052, %v2148
        %v2181 = vmul.f32 %v2053, %v2149
        %v2182 = vmul.f32 %v2054, %v2150
        %v2183 = vmul.f32 %v2055, %v2151
        %v2184 = vmul.f32 %v2056, %v2152
        %v2185 = vmul.f32 %v2057, %v2153
        %v2186 = vmul.f32 %v2058, %v2154
        %v2187 = vmul.f32 %v2059, %v2155
        %v2188 = vmul.f32 %v2060, %v2156
        %v2189 = vmul.f32 %v2061, %v2157
        %v2190 = vmul.f32 %v2062, %v2158
        %v2191 = vmul.f32 %v2063, %v2159
        %v2192 = vmul.f32 %v2064, %v2160
        %v2193 = vmul.f32 %v2065, %v2161
        %v2194 = vmul.f32 %v2066, %v2162
        %v2195 = vmul.f32 %v2067, %v2163
        %v2196 = vmul.f32 %v2068, %v2164
        %v2197 = vmul.f32 %v2069, %v2165
        %v2198 = vmul.f32 %v2070, %v2166
        %v2199 = vmul.f32 %v2071, %v2167
        %v2200 = vmul.f32 %v2072, %v2168
        %v2201 = vmul.f32 %v2073, %v2169
        %v2202 = vmul.f32 %v2074, %v2170
        %v2203 = vpack.c.bf16 %v2172, %v2171
        %v2204 = vpack.c.bf16 %v2174, %v2173
        %v2205 = vpack.c.bf16 %v2176, %v2175
        %v2206 = vpack.c.bf16 %v2178, %v2177
        %v2207 = vpack.c.bf16 %v2180, %v2179
        %v2208 = vpack.c.bf16 %v2182, %v2181
        %v2209 = vpack.c.bf16 %v2184, %v2183
        %v2210 = vpack.c.bf16 %v2186, %v2185
        %v2211 = vpack.c.bf16 %v2188, %v2187
        %v2212 = vpack.c.bf16 %v2190, %v2189
        %v2213 = vpack.c.bf16 %v2192, %v2191
        %v2214 = vpack.c.bf16 %v2194, %v2193
        %v2215 = vpack.c.bf16 %v2196, %v2195
        %v2216 = vpack.c.bf16 %v2198, %v2197
        %v2217 = vpack.c.bf16 %v2200, %v2199
        %v2218 = vpack.c.bf16 %v2202, %v2201
        %2219 = vxpose.xlu0.c.b16.start [1/8] %v2203, 128
        %2220 = vxpose.xlu0.c.b16.cont [2/8] %v2204, 128
        %2221 = vxpose.xlu0.c.b16.cont [3/8] %v2205, 128
        %2222 = vxpose.xlu0.c.b16.cont [4/8] %v2206, 128
        %2223 = vxpose.xlu0.c.b16.cont [5/8] %v2207, 128
        %2224 = vxpose.xlu0.c.b16.cont [6/8] %v2208, 128
        %2225 = vxpose.xlu0.c.b16.cont [7/8] %v2209, 128
        %2226 = vxpose.xlu0.c.b16.end [8/8] %v2210, 128
        %v2227 = vpop.trf.xlu0
        %v2228 = vpop.trf.xlu0
        %v2229 = vpop.trf.xlu0
        %v2230 = vpop.trf.xlu0
        %v2231 = vpop.trf.xlu0
        %v2232 = vpop.trf.xlu0
        %v2233 = vpop.trf.xlu0
        %v2234 = vpop.trf.xlu0
        %2235 = vxpose.xlu0.c.b16.start [1/8] %v2211, 128
        %2236 = vxpose.xlu0.c.b16.cont [2/8] %v2212, 128
        %2237 = vxpose.xlu0.c.b16.cont [3/8] %v2213, 128
        %2238 = vxpose.xlu0.c.b16.cont [4/8] %v2214, 128
        %2239 = vxpose.xlu0.c.b16.cont [5/8] %v2215, 128
        %2240 = vxpose.xlu0.c.b16.cont [6/8] %v2216, 128
        %2241 = vxpose.xlu0.c.b16.cont [7/8] %v2217, 128
        %2242 = vxpose.xlu0.c.b16.end [8/8] %v2218, 128
        %v2243 = vpop.trf.xlu0
        %v2244 = vpop.trf.xlu0
        %v2245 = vpop.trf.xlu0
        %v2246 = vpop.trf.xlu0
        %v2247 = vpop.trf.xlu0
        %v2248 = vpop.trf.xlu0
        %v2249 = vpop.trf.xlu0
        %v2250 = vpop.trf.xlu0
        %2251 = vmatprep.subr.bf16.mxu0 0
        %2252 = vmatpush1.bf16.msra.mxu0 %v1623
        %2253 = vmatprep.subr.bf16.mxu0 0
        %2254 = vmatpush1.bf16.msra.mxu0 %v1624
        %2255 = vmatprep.subr.bf16.mxu0 0
        %2256 = vmatpush1.bf16.msra.mxu0 %v1625
        %2257 = vmatprep.subr.bf16.mxu0 0
        %2258 = vmatpush1.bf16.msra.mxu0 %v1626
        %2259 = vmatprep.subr.bf16.mxu0 0
        %2260 = vmatpush1.bf16.msra.mxu0 %v1627
        %2261 = vmatprep.subr.bf16.mxu0 0
        %2262 = vmatpush1.bf16.msra.mxu0 %v1628
        %2263 = vmatprep.subr.bf16.mxu0 0
        %2264 = vmatpush1.bf16.msra.mxu0 %v1629
        %2265 = vmatprep.subr.bf16.mxu0 0
        %2266 = vmatpush1.bf16.msra.mxu0 %v1630
        %2267 = vmatprep.subr.bf16.mxu0 0
        %2268 = vmatpush1.bf16.msra.mxu0 %v1631
        %2269 = vmatprep.subr.bf16.mxu0 0
        %2270 = vmatpush1.bf16.msra.mxu0 %v1632
        %2271 = vmatprep.subr.bf16.mxu0 0
        %2272 = vmatpush1.bf16.msra.mxu0 %v1633
        %2273 = vmatprep.subr.bf16.mxu0 0
        %2274 = vmatpush1.bf16.msra.mxu0 %v1634
        %2275 = vmatprep.subr.bf16.mxu0 0
        %2276 = vmatpush1.bf16.msra.mxu0 %v1635
        %2277 = vmatprep.subr.bf16.mxu0 0
        %2278 = vmatpush1.bf16.msra.mxu0 %v1636
        %2279 = vmatprep.subr.bf16.mxu0 0
        %2280 = vmatpush1.bf16.msra.mxu0 %v1637
        %2281 = vmatprep.subr.bf16.mxu0 0
        %2282 = vmatpush1.bf16.msra.mxu0 %v1638
        %2283 = vmatprep.mubr.bf16.mxu0 %v2243
        %2284 = vmatmul.mubr.bf16.gmra.mrb[0].mxu0 %v2227
        %v2285 = vpop.f32.mrb[0].mxu0
        %v2286 = vadd.f32 0.0, %v2285
        %v2287 = vpop.f32.mrb[0].mxu0
        %v2288 = vpop.f32.mrb[0].mxu0
        %v2289 = vpop.f32.mrb[0].mxu0
        %2290 = vmatprep.mubr.bf16.mxu0 %v2244
        %2291 = vmatmul.mubr.bf16.gmra.mrb[0].mxu0 %v2228
        %v2292 = vpop.f32.mrb[0].mxu0
        %v2293 = vpop.f32.mrb[0].mxu0
        %v2294 = vpop.f32.mrb[0].mxu0
        %v2295 = vpop.f32.mrb[0].mxu0
        %2296 = vmatprep.mubr.bf16.mxu0 %v2245
        %2297 = vmatmul.mubr.bf16.gmra.mrb[0].mxu0 %v2229
        %v2298 = vpop.f32.mrb[0].mxu0
        %v2299 = vpop.f32.mrb[0].mxu0
        %v2300 = vpop.f32.mrb[0].mxu0
        %v2301 = vpop.f32.mrb[0].mxu0
        %2302 = vmatprep.mubr.bf16.mxu0 %v2246
        %2303 = vmatmul.mubr.bf16.gmra.mrb[0].mxu0 %v2230
        %v2304 = vpop.f32.mrb[0].mxu0
        %v2305 = vpop.f32.mrb[0].mxu0
        %v2306 = vpop.f32.mrb[0].mxu0
        %v2307 = vpop.f32.mrb[0].mxu0
        %2308 = vmatprep.mubr.bf16.mxu0 %v2247
        %2309 = vmatmul.mubr.bf16.gmra.mrb[0].mxu0 %v2231
        %v2310 = vpop.f32.mrb[0].mxu0
        %v2311 = vpop.f32.mrb[0].mxu0
        %v2312 = vpop.f32.mrb[0].mxu0
        %v2313 = vpop.f32.mrb[0].mxu0
        %2314 = vmatprep.mubr.bf16.mxu0 %v2248
        %2315 = vmatmul.mubr.bf16.gmra.mrb[0].mxu0 %v2232
        %v2316 = vpop.f32.mrb[0].mxu0
        %v2317 = vpop.f32.mrb[0].mxu0
        %v2318 = vpop.f32.mrb[0].mxu0
        %v2319 = vpop.f32.mrb[0].mxu0
        %2320 = vmatprep.mubr.bf16.mxu0 %v2249
        %2321 = vmatmul.mubr.bf16.gmra.mrb[0].mxu0 %v2233
        %v2322 = vpop.f32.mrb[0].mxu0
        %v2323 = vpop.f32.mrb[0].mxu0
        %v2324 = vpop.f32.mrb[0].mxu0
        %v2325 = vpop.f32.mrb[0].mxu0
        %2326 = vmatprep.mubr.bf16.mxu0 %v2250
        %2327 = vmatmul.mubr.bf16.gmra.mrb[0].mxu0 %v2234
        %v2328 = vpop.f32.mrb[0].mxu0
        %v2329 = vpop.f32.mrb[0].mxu0
        %v2330 = vpop.f32.mrb[0].mxu0
        %v2331 = vpop.f32.mrb[0].mxu0
        %2332 = vdwg.mxu0
        %2333 = vmatprep.subr.bf16.mxu0 0
        %2334 = vmatpush1.bf16.msra.mxu0 1065369472
        %2335 = vmatprep.subr.bf16.mxu0 0
        %2336 = vmatpush1.bf16.msra.mxu0 1065369472
        %2337 = vmatprep.subr.bf16.mxu0 0
        %2338 = vmatpush1.bf16.msra.mxu0 1065369472
        %2339 = vmatprep.subr.bf16.mxu0 0
        %2340 = vmatpush1.bf16.msra.mxu0 1065369472
        %2341 = vmatprep.subr.bf16.mxu0 0
        %2342 = vmatpush1.bf16.msra.mxu0 1065369472
        %2343 = vmatprep.subr.bf16.mxu0 0
        %2344 = vmatpush1.bf16.msra.mxu0 1065369472
        %2345 = vmatprep.subr.bf16.mxu0 0
        %2346 = vmatpush1.bf16.msra.mxu0 1065369472
        %2347 = vmatprep.subr.bf16.mxu0 0
        %2348 = vmatpush1.bf16.msra.mxu0 1065369472
        %2349 = vmatprep.subr.bf16.mxu0 0
        %2350 = vmatpush1.bf16.msra.mxu0 1065369472
        %2351 = vmatprep.subr.bf16.mxu0 0
        %2352 = vmatpush1.bf16.msra.mxu0 1065369472
        %2353 = vmatprep.subr.bf16.mxu0 0
        %2354 = vmatpush1.bf16.msra.mxu0 1065369472
        %2355 = vmatprep.subr.bf16.mxu0 0
        %2356 = vmatpush1.bf16.msra.mxu0 1065369472
        %2357 = vmatprep.subr.bf16.mxu0 0
        %2358 = vmatpush1.bf16.msra.mxu0 1065369472
        %2359 = vmatprep.subr.bf16.mxu0 0
        %2360 = vmatpush1.bf16.msra.mxu0 1065369472
        %2361 = vmatprep.subr.bf16.mxu0 0
        %2362 = vmatpush1.bf16.msra.mxu0 1065369472
        %2363 = vmatprep.subr.bf16.mxu0 0
        %2364 = vmatpush1.bf16.msra.mxu0 1065369472
        %2365 = vmatprep.mubr.bf16.mxu0 %v2243
        %2366 = vmatmul.mubr.bf16.gmra.mrb[0].mxu0 %v2227
        %v2367 = vpop.f32.mrb[0].mxu0
        %v2368 = vadd.f32 0.0, %v2367
        %v2369 = vpop.f32.mrb[0].mxu0
        %v2370 = vpop.f32.mrb[0].mxu0
        %v2371 = vpop.f32.mrb[0].mxu0
        %2372 = vmatprep.mubr.bf16.mxu0 %v2244
        %2373 = vmatmul.mubr.bf16.gmra.mrb[0].mxu0 %v2228
        %v2374 = vpop.f32.mrb[0].mxu0
        %v2375 = vpop.f32.mrb[0].mxu0
        %v2376 = vpop.f32.mrb[0].mxu0
        %v2377 = vpop.f32.mrb[0].mxu0
        %2378 = vmatprep.mubr.bf16.mxu0 %v2245
        %2379 = vmatmul.mubr.bf16.gmra.mrb[0].mxu0 %v2229
        %v2380 = vpop.f32.mrb[0].mxu0
        %v2381 = vpop.f32.mrb[0].mxu0
        %v2382 = vpop.f32.mrb[0].mxu0
        %v2383 = vpop.f32.mrb[0].mxu0
        %2384 = vmatprep.mubr.bf16.mxu0 %v2246
        %2385 = vmatmul.mubr.bf16.gmra.mrb[0].mxu0 %v2230
        %v2386 = vpop.f32.mrb[0].mxu0
        %v2387 = vpop.f32.mrb[0].mxu0
        %v2388 = vpop.f32.mrb[0].mxu0
        %v2389 = vpop.f32.mrb[0].mxu0
        %2390 = vmatprep.mubr.bf16.mxu0 %v2247
        %2391 = vmatmul.mubr.bf16.gmra.mrb[0].mxu0 %v2231
        %v2392 = vpop.f32.mrb[0].mxu0
        %v2393 = vpop.f32.mrb[0].mxu0
        %v2394 = vpop.f32.mrb[0].mxu0
        %v2395 = vpop.f32.mrb[0].mxu0
        %2396 = vmatprep.mubr.bf16.mxu0 %v2248
        %2397 = vmatmul.mubr.bf16.gmra.mrb[0].mxu0 %v2232
        %v2398 = vpop.f32.mrb[0].mxu0
        %v2399 = vpop.f32.mrb[0].mxu0
        %v2400 = vpop.f32.mrb[0].mxu0
        %v2401 = vpop.f32.mrb[0].mxu0
        %2402 = vmatprep.mubr.bf16.mxu0 %v2249
        %2403 = vmatmul.mubr.bf16.gmra.mrb[0].mxu0 %v2233
        %v2404 = vpop.f32.mrb[0].mxu0
        %v2405 = vpop.f32.mrb[0].mxu0
        %v2406 = vpop.f32.mrb[0].mxu0
        %v2407 = vpop.f32.mrb[0].mxu0
        %2408 = vmatprep.mubr.bf16.mxu0 %v2250
        %2409 = vmatmul.mubr.bf16.gmra.mrb[0].mxu0 %v2234
        %v2410 = vpop.f32.mrb[0].mxu0
        %v2411 = vpop.f32.mrb[0].mxu0
        %v2412 = vpop.f32.mrb[0].mxu0
        %v2413 = vpop.f32.mrb[0].mxu0
        %2414 = vdwg.mxu0
        %v2415 = vld [vmem:[%s4] sm:$0xff]
        %2417 = vset.pattern.permute.xlu0 0
        %2418 = vperm.xlu0 %2417, %v2368
        %v2419 = vpop.permute.xlu0 %2418
        %v2421 = vmul.f32 %v2419, %v2415
        %v2422 = vsub.f32 %v2286, %v2421
        %v2423 = vmul.f32 %v2422, %v2422
        %v2424 = vsel %vm1430, %v2423, 0.0
        %2425 = vadd.xlane.f32.xlu0 %v2424
        %v2426 = vpop.xlane.xlu0 %2425
        %v2427 = vmax.f32 %v2426, 1e-24
        %v2428 = vrsqrt.pop %v2427
        %v2429 = vmul.f32 %v2422, %v2428
        %v2430 = vmul.f32 %v2429, 0.35355338
        %2431 = vst.msk [vmem:[%s217] sm:$0xff] %vm1430, %v2430
        %s2432 = sand.u32 %s137, 1
        %s2433 = scalar_lea.sflag [#allocation3], %s2432
        %s2434 = sand.u32 %s137, 1
        %s2435 = smul.addr %s2434, 8
        %s2436 = scalar_lea.vmem [#allocation2], %s2435
        // Predicated region
        $region41: #{tpu_custom_call.1} parent=39 // pred_check
          %p2437 = pneg %p147
        $region42: #{tpu_custom_call.1} parent=39 // pred_check_branch
          %2439 = sbr.rel (%p2437) target = $region44
        $region43: #{tpu_custom_call.1} parent=39 // pred_region
          %s2441 = ssub.s32 128, 128
          %2442 = vsyncadd %s2433, %s2441
          %s2443 = smul.addr %s19, 128
          %s2444 = scalar_lea.hbm %s5, %s2443
          %s2446 = sshll.u32 %s2436, 4
          %s2447 = int_to_ptr.vmem [resolvable:$true] %s2446
          %2449 = dma.vmem_to_hbm [thread:$0]  %s2447, 128, %s2444, %s2433
        $region44: #{tpu_custom_call.1} parent=39 // pred_fallthru
          _
      $region40: #{tpu_custom_call.1} parent=5 // pred_fallthru
        _
      %p2450 = scmp.le.s32.totalorder 2, %s14
      // Predicated region
      $region45: #{tpu_custom_call.1} parent=5 // pred_check
        %p2451 = pneg %p2450
      $region46: #{tpu_custom_call.1} parent=5 // pred_check_branch
        %2453 = sbr.rel (%p2451) target = $region48
      $region47: #{tpu_custom_call.1} parent=5 // pred_region
        %s2454 = ssub.s32 %s14, 2
        // Predicated region
        $region49: #{tpu_custom_call.1} parent=47 // pred_check
          %p2455 = pneg %p153
        $region50: #{tpu_custom_call.1} parent=47 // pred_check_branch
          %2457 = sbr.rel (%p2455) target = $region52
        $region51: #{tpu_custom_call.1} parent=47 // pred_region
          %s2458 = sand.u32 %s138, 1
          %s2459 = scalar_lea.sflag [#allocation3], %s2458
          %s2460 = sand.u32 %s138, 1
          %s2461 = smul.addr %s2460, 8
          %s2462 = scalar_lea.vmem [#allocation2], %s2461
          %2463 = dma.done %s2459, 128
        $region52: #{tpu_custom_call.1} parent=47 // pred_fallthru
          _
      $region48: #{tpu_custom_call.1} parent=5 // pred_fallthru
        _
    $region6: #{tpu_custom_call.1} parent=1 // loop_footer
      %s18 = sadd.s32 1, %s14
    $region7: #{tpu_custom_call.1} parent=1 // loop_footer_branch
      %13 = sbr.rel target = $region3
    $region8: #{tpu_custom_call.1} parent=1 // loop_exit
      _
    %2464 = vsyncpa [#allocation3], 1
    %s2465 = scalar_lea.sflag [#allocation3], 1
    %2466 = vsyncpa %s2465, 1

</llo_original>
